<compile_context>
chip_gen: v7x
topology: tpu7x:2x2x1
jax: 0.10.0
libtpu: 0.0.40
codegen_flags: <defaults>
</compile_context>

<pallas_src>
import numpy as np
import jax
import jax.numpy as jnp
from jax import lax
from jax.experimental import pallas as pl
from jax.experimental.pallas import tpu as pltpu


# ----------------------------- problem sizes --------------------------------
B = 2            # batch
T = 8            # t   (time steps == attention "channels")
TP = 8           # tp  (target temporal length for Tconv wrap-pad)
F_IN = 4         # in_chanel
C_OUT = 8        # out_chanel
N = 16           # number of graph nodes
K = 3            # Chebyshev order
T_RED = T // 4   # channel-attention reduction (reduction_ratio = 4)
LN_EPS = 1e-5    # nn.LayerNorm default


# ============================ fused Pallas kernel ============================

def _branch1_kernel(
        x_ref, xres_ref,
        aw1_ref, ab1_ref, aw2_ref, ab2_ref,
        wgc1_ref, wgc2_ref,
        sa1_ref, sb1_ref, w0a_ref, w1a_ref, tba_ref,
        sa2_ref, sb2_ref, w0b_ref, w1b_ref, tbb_ref,
        resw_ref, resb_ref, mavg_ref, gam_ref, bet_ref,
        o_ref):
    """Whole Branch1_block for ONE batch element, fully VMEM resident.

    x_ref    : (1, T, F_IN*N)   time-major input slab
    xres_ref : (1, Tp, F_IN*N)  (time-sliced) input for the residual branch
    o_ref    : (1, Tp, C_OUT*N) lane-dense output slab (C_OUT*N == 128)
    """
    f32 = jnp.float32
    xb = x_ref[0]                                                 # (T, F*N)

    # ---- SE channel attention over time (pure VPU: bcast-mul + reduces) ----
    m = jnp.mean(xb, axis=-1, keepdims=True)                      # (T, 1) avg pool
    h = jnp.sum(aw1_ref[...] * m, axis=0, keepdims=True) + ab1_ref[...]   # (1, T//4)
    h = jnp.maximum(h, 0.0)
    s = jnp.sum(aw2_ref[...] * h, axis=-1, keepdims=True) + ab2_ref[...]  # (T, 1)
    s = jax.nn.sigmoid(s)
    x_att = xb * s                                                # att * x

    # ---- Chebyshev graph conv x2 (+ReLU): one matmul per layer --------------
    # weights were pre-folded on the host into sum_k kron(Theta_k, T_k)
    xg = jnp.maximum(
        jnp.dot(x_att, wgc1_ref[...], preferred_element_type=f32), 0.0)   # (T, C*N)
    xg = jnp.maximum(
        jnp.dot(xg, wgc2_ref[...], preferred_element_type=f32), 0.0)      # (T, C*N)

    # ---- temporal conv (1,2) over time + wrap-pad to Tp + ReLU, twice -------
    def tconv(a, sa, sb, w0bd, w1bd, bflat):
        ta = jnp.dot(a, w0bd, preferred_element_type=f32)   # tap 0 @ every time step
        tb = jnp.dot(a, w1bd, preferred_element_type=f32)   # tap 1 @ every time step
        # selection matmuls implement the (i, i+1) pairing + front wrap-pad
        y = (jnp.dot(sa, ta, preferred_element_type=f32)
             + jnp.dot(sb, tb, preferred_element_type=f32)
             + bflat)
        return jnp.maximum(y, 0.0)                           # (Tp, C*N)

    xt = tconv(xg, sa1_ref[...], sb1_ref[...], w0a_ref[...], w1a_ref[...], tba_ref[...])
    xt = tconv(xt, sa2_ref[...], sb2_ref[...], w0b_ref[...], w1b_ref[...], tbb_ref[...])

    # ---- residual 1x1 conv + add + LayerNorm(N) + ReLU ----------------------
    res = jnp.dot(xres_ref[0], resw_ref[...], preferred_element_type=f32) + resb_ref[...]
    y = xt + res                                             # (Tp, C*N)
    mu = jnp.dot(y, mavg_ref[...], preferred_element_type=f32)   # per-(t,c) mean, bcast over n
    d = y - mu
    var = jnp.dot(d * d, mavg_ref[...], preferred_element_type=f32)
    yn = d * lax.rsqrt(var + LN_EPS)
    o_ref[0] = jnp.maximum(yn * gam_ref[...] + bet_ref[...], 0.0)


_PREP_ORDER = ("aw1", "ab1", "aw2", "ab2", "wgc1", "wgc2",
               "sa1", "sb1", "w0a", "w1a", "tba",
               "sa2", "sb2", "w0b", "w1b", "tbb",
               "resw", "resb", "mavg", "gam", "bet")


def branch1_block(x, prep):
    """x: (B, T, F_IN, N) -> (B, Tp, C_OUT, N), single fused pallas_call."""
    Bq, Tq, Fq, Nq = x.shape
    x2 = x.reshape(Bq, Tq, Fq * Nq)                 # time-major slab, pure reshape
    t_out = prep["sa2"].shape[0]                    # static: final temporal length
    on = prep["wgc1"].shape[1]                      # static: C_OUT * N (== 128)
    tshort = Tq - t_out
    x_res = x2 if tshort == 0 else x2[:, tshort:, :]

    weights = [prep[k] for k in _PREP_ORDER]

    def _full(a):                                   # whole-array block, fetched once
        nd = a.ndim
        return pl.BlockSpec(a.shape, lambda b, _nd=nd: (0,) * _nd)

    out = pl.pallas_call(
        _branch1_kernel,
        out_shape=jax.ShapeDtypeStruct((Bq, t_out, on), jnp.float32),
        grid=(Bq,),
        in_specs=[pl.BlockSpec((1, Tq, Fq * Nq), lambda b: (b, 0, 0)),
                  pl.BlockSpec((1, t_out, Fq * Nq), lambda b: (b, 0, 0))]
                 + [_full(a) for a in weights],
        out_specs=pl.BlockSpec((1, t_out, on), lambda b: (b, 0, 0)),
        compiler_params=pltpu.CompilerParams(dimension_semantics=("parallel",)),
    )(x2, x_res, *weights)
    return out.reshape(Bq, t_out, on // Nq, Nq)


# ================= setup-time weight preparation (host numpy) ================

def build_cheb(adj, k):
    """scaled_Laplacian + cheb_polynomial from GraphConvolution.__init__.
    NOTE: the reference code uses an ELEMENTWISE product in the recurrence;
    reproduced as-is (do not 'fix')."""
    d = np.diag(adj.sum(axis=1))
    lap = d - adj
    lambda_max = float(np.linalg.eigvalsh(lap).max())   # == eigs(L,1,'LR') for symmetric L
    l_tilde = 2.0 * lap / lambda_max - np.identity(adj.shape[0])
    polys = [np.identity(adj.shape[0]), l_tilde.copy()]
    for i in range(2, k):
        polys.append(2.0 * l_tilde * polys[i - 1] - polys[i - 2])   # elementwise, as in source
    return jnp.asarray(np.stack(polys), dtype=jnp.float32)


def prepare_weights(p, cheb):
    """Fold the module weights into lane-dense, matmul-ready operands for the
    fused kernel (pure host-side re-parameterization, done once)."""
    cheb_np = np.asarray(jax.device_get(cheb), dtype=np.float32)      # (K, N, N)
    eye_n = np.eye(N, dtype=np.float32)

    def gc_weight(theta_t):
        # theta_t[k] == Theta_k^T (C_out, C_in); whole graph conv collapses to
        # one (C_in*N, C_out*N) matrix:  sum_k kron(Theta_k, T_k)
        th = np.asarray(jax.device_get(theta_t), dtype=np.float32)
        w = np.zeros((th.shape[2] * N, th.shape[1] * N), np.float32)
        for k in range(th.shape[0]):
            w += np.kron(th[k].T, cheb_np[k])
        return jnp.asarray(w)

    def chan_bd(w):        # (C_out, C_in) channel mix -> kron(w^T, I_N)
        wn = np.asarray(jax.device_get(w), dtype=np.float32)
        return jnp.asarray(np.kron(wn.T, eye_n))

    def bias_flat(b):      # (C_out, 1) -> (1, C_out*N)
        bn = np.asarray(jax.device_get(b), dtype=np.float32).reshape(1, -1)
        return jnp.asarray(np.kron(bn, np.ones((1, N), np.float32)))

    def sel_mats(t_in, tp):
        # conv output i uses input times (i, i+1); wrap-pad prepends the last
        # pad conv outputs (Tconv1.forward semantics).
        t_conv = t_in - 1
        pad = max(tp - t_conv, 0)
        assert pad <= t_conv, "wrap-pad larger than conv output not supported"
        t_out = t_conv + pad
        sa = np.zeros((t_out, t_in), np.float32)
        sb = np.zeros((t_out, t_in), np.float32)
        for j in range(t_out):
            i = j - pad if j >= pad else t_conv - pad + j
            sa[j, i] = 1.0
            sb[j, i + 1] = 1.0
        return jnp.asarray(sa), jnp.asarray(sb), t_out

    sa1, sb1, t1 = sel_mats(T, TP)
    sa2, sb2, _ = sel_mats(t1, TP)

    mavg = np.kron(np.eye(C_OUT, dtype=np.float32),
                   np.full((N, N), 1.0 / N, dtype=np.float32))        # LayerNorm(N) averager
    ln_g = np.asarray(jax.device_get(p["ln_g"]), dtype=np.float32).reshape(1, N)
    ln_b = np.asarray(jax.device_get(p["ln_b"]), dtype=np.float32).reshape(1, N)

    return dict(
        aw1=p["att_w1"], ab1=p["att_b1"], aw2=p["att_w2"], ab2=p["att_b2"],
        wgc1=gc_weight(p["theta1_t"]), wgc2=gc_weight(p["theta2_t"]),
        sa1=sa1, sb1=sb1,
        w0a=chan_bd(p["tc1_w0"]), w1a=chan_bd(p["tc1_w1"]), tba=bias_flat(p["tc1_b"]),
        sa2=sa2, sb2=sb2,
        w0b=chan_bd(p["tc2_w0"]), w1b=chan_bd(p["tc2_w1"]), tbb=bias_flat(p["tc2_b"]),
        resw=chan_bd(p["res_w"]), resb=bias_flat(p["res_b"]),
        mavg=jnp.asarray(mavg),
        gam=jnp.asarray(np.tile(ln_g, (1, C_OUT))),
        bet=jnp.asarray(np.tile(ln_b, (1, C_OUT))),
    )


def init_params(key):
    ks = jax.random.split(key, 16)
    def rn(k, shape, scale):
        return scale * jax.random.normal(k, shape, jnp.float32)
    return {
        # ChanelAttention: w1 = MLP1.weight^T (T, T//4); w2 = MLP2.weight (T, T//4)
        "att_w1": rn(ks[0], (T, T_RED), 0.3), "att_b1": rn(ks[1], (1, T_RED), 0.1),
        "att_w2": rn(ks[2], (T, T_RED), 0.3), "att_b2": rn(ks[3], (T, 1), 0.1),
        # GraphConvolution Theta_k^T, stacked over K
        "theta1_t": rn(ks[4], (K, C_OUT, F_IN), 0.3),
        "theta2_t": rn(ks[5], (K, C_OUT, C_OUT), 0.2),
        # Tconv1 x2: two taps of the (1,2) kernel + bias
        "tc1_w0": rn(ks[6], (C_OUT, C_OUT), 0.2), "tc1_w1": rn(ks[7], (C_OUT, C_OUT), 0.2),
        "tc1_b": rn(ks[8], (C_OUT, 1), 0.1),
        "tc2_w0": rn(ks[9], (C_OUT, C_OUT), 0.2), "tc2_w1": rn(ks[10], (C_OUT, C_OUT), 0.2),
        "tc2_b": rn(ks[11], (C_OUT, 1), 0.1),
        # residual 1x1 conv
        "res_w": rn(ks[12], (C_OUT, F_IN), 0.3), "res_b": rn(ks[13], (C_OUT, 1), 0.1),
        # LayerNorm(N) affine (PyTorch default init)
        "ln_g": jnp.ones((1, N), jnp.float32), "ln_b": jnp.zeros((1, N), jnp.float32),
    }


# ------------------------- pure-JAX reference check --------------------------

def reference(x, cheb, p):
    hi = lax.Precision.HIGHEST
    m = jnp.mean(x, axis=(2, 3))                                          # (B, T)
    h = jnp.maximum(m @ p["att_w1"] + p["att_b1"].reshape(1, -1), 0.0)
    s = jax.nn.sigmoid(h @ p["att_w2"].T + p["att_b2"].reshape(1, -1))
    x_att = x * s[:, :, None, None]

    def gc(xin, theta_t):
        rhs = jnp.einsum('btfm,kmn->kbtfn', xin, cheb, precision=hi)
        return jnp.einsum('kof,kbtfn->bton', theta_t, rhs, precision=hi)

    xg = jnp.maximum(gc(x_att, p["theta1_t"]), 0.0)
    xg = jnp.maximum(gc(xg, p["theta2_t"]), 0.0)

    def tconv(xin, w0, w1, b):
        y = (jnp.einsum('oc,btcn->bton', w0, xin[:, :-1], precision=hi)
             + jnp.einsum('oc,btcn->bton', w1, xin[:, 1:], precision=hi)
             + b.reshape(1, 1, -1, 1))
        pad_n = max(TP - y.shape[1], 0)
        if pad_n > 0:
            y = jnp.concatenate([y[:, -pad_n:], y], axis=1)
        return jnp.maximum(y, 0.0)

    xt = tconv(xg, p["tc1_w0"], p["tc1_w1"], p["tc1_b"])
    xt = tconv(xt, p["tc2_w0"], p["tc2_w1"], p["tc2_b"])
    tshort = xg.shape[1] - xt.shape[1]
    xs = x[:, tshort:, :, :]
    res = jnp.einsum('of,btfn->bton', p["res_w"], xs, precision=hi) + p["res_b"].reshape(1, 1, -1, 1)
    y = xt + res
    mu = jnp.mean(y, axis=-1, keepdims=True)
    var = jnp.mean((y - mu) ** 2, axis=-1, keepdims=True)
    yn = (y - mu) / jnp.sqrt(var + LN_EPS)
    yn = yn * p["ln_g"].reshape(1, 1, 1, -1) + p["ln_b"].reshape(1, 1, 1, -1)
    return jnp.maximum(yn, 0.0)


# ================================== main =====================================

if __name__ == "__main__":
    key = jax.random.PRNGKey(0)
    kx, kadj, kparams = jax.random.split(key, 3)

    x = jax.random.normal(kx, (B, T, F_IN, N), jnp.float32)

    # adjacency: build a WRITABLE host copy (np.asarray of a jax array is read-only)
    adj_raw = np.array(jax.device_get(jax.random.uniform(kadj, (N, N), jnp.float32)),
                       dtype=np.float32)
    adj = (adj_raw + adj_raw.T) * 0.5
    np.fill_diagonal(adj, 0.0)
    cheb = build_cheb(adj, K)

    params = init_params(kparams)
    prep = prepare_weights(params, cheb)     # setup-time weight folding (host)

    fwd = jax.jit(branch1_block)
    out = fwd(x, prep)
    jax.block_until_ready(out)
    assert out.shape == (B, TP, C_OUT, N), out.shape

    ref = reference(x, cheb, params)
    np.testing.assert_allclose(np.asarray(out), np.asarray(ref), rtol=5e-2, atol=5e-2)

    print("KERNEL_OK")
</pallas_src>

<mosaic_0001>
module attributes {stable_mosaic.version = 11 : i64} {
  func.func @_branch1_kernel(%arg0: i32, %arg1: memref<1x8x64xf32, #tpu.memory_space<vmem>>, %arg2: memref<1x8x64xf32, #tpu.memory_space<vmem>>, %arg3: memref<8x2xf32, #tpu.memory_space<vmem>>, %arg4: memref<1x2xf32, #tpu.memory_space<vmem>>, %arg5: memref<8x2xf32, #tpu.memory_space<vmem>>, %arg6: memref<8x1xf32, #tpu.memory_space<vmem>>, %arg7: memref<64x128xf32, #tpu.memory_space<vmem>>, %arg8: memref<128x128xf32, #tpu.memory_space<vmem>>, %arg9: memref<8x8xf32, #tpu.memory_space<vmem>>, %arg10: memref<8x8xf32, #tpu.memory_space<vmem>>, %arg11: memref<128x128xf32, #tpu.memory_space<vmem>>, %arg12: memref<128x128xf32, #tpu.memory_space<vmem>>, %arg13: memref<1x128xf32, #tpu.memory_space<vmem>>, %arg14: memref<8x8xf32, #tpu.memory_space<vmem>>, %arg15: memref<8x8xf32, #tpu.memory_space<vmem>>, %arg16: memref<128x128xf32, #tpu.memory_space<vmem>>, %arg17: memref<128x128xf32, #tpu.memory_space<vmem>>, %arg18: memref<1x128xf32, #tpu.memory_space<vmem>>, %arg19: memref<64x128xf32, #tpu.memory_space<vmem>>, %arg20: memref<1x128xf32, #tpu.memory_space<vmem>>, %arg21: memref<128x128xf32, #tpu.memory_space<vmem>>, %arg22: memref<1x128xf32, #tpu.memory_space<vmem>>, %arg23: memref<1x128xf32, #tpu.memory_space<vmem>>, %arg24: memref<1x8x128xf32, #tpu.memory_space<vmem>>) attributes {dimension_semantics = [#tpu.dimension_semantics<parallel>], iteration_bounds = array<i64: 2>, scalar_prefetch = 0 : i64, scratch_operands = 0 : i64, tpu.core_type = #tpu.core_type<tc>, window_params = [{transform_indices = @transform_0, window_bounds = array<i64: 1, 8, 64>}, {transform_indices = @transform_1, window_bounds = array<i64: 1, 8, 64>}, {pipeline_mode = #tpu.pipeline_mode<synchronous>, transform_indices = @transform_2, window_bounds = array<i64: 8, 2>}, {pipeline_mode = #tpu.pipeline_mode<synchronous>, transform_indices = @transform_3, window_bounds = array<i64: 1, 2>}, {pipeline_mode = #tpu.pipeline_mode<synchronous>, transform_indices = @transform_4, window_bounds = array<i64: 8, 2>}, {pipeline_mode = #tpu.pipeline_mode<synchronous>, transform_indices = @transform_5, window_bounds = array<i64: 8, 1>}, {pipeline_mode = #tpu.pipeline_mode<synchronous>, transform_indices = @transform_6, window_bounds = array<i64: 64, 128>}, {pipeline_mode = #tpu.pipeline_mode<synchronous>, transform_indices = @transform_7, window_bounds = array<i64: 128, 128>}, {pipeline_mode = #tpu.pipeline_mode<synchronous>, transform_indices = @transform_8, window_bounds = array<i64: 8, 8>}, {pipeline_mode = #tpu.pipeline_mode<synchronous>, transform_indices = @transform_9, window_bounds = array<i64: 8, 8>}, {pipeline_mode = #tpu.pipeline_mode<synchronous>, transform_indices = @transform_10, window_bounds = array<i64: 128, 128>}, {pipeline_mode = #tpu.pipeline_mode<synchronous>, transform_indices = @transform_11, window_bounds = array<i64: 128, 128>}, {pipeline_mode = #tpu.pipeline_mode<synchronous>, transform_indices = @transform_12, window_bounds = array<i64: 1, 128>}, {pipeline_mode = #tpu.pipeline_mode<synchronous>, transform_indices = @transform_13, window_bounds = array<i64: 8, 8>}, {pipeline_mode = #tpu.pipeline_mode<synchronous>, transform_indices = @transform_14, window_bounds = array<i64: 8, 8>}, {pipeline_mode = #tpu.pipeline_mode<synchronous>, transform_indices = @transform_15, window_bounds = array<i64: 128, 128>}, {pipeline_mode = #tpu.pipeline_mode<synchronous>, transform_indices = @transform_16, window_bounds = array<i64: 128, 128>}, {pipeline_mode = #tpu.pipeline_mode<synchronous>, transform_indices = @transform_17, window_bounds = array<i64: 1, 128>}, {pipeline_mode = #tpu.pipeline_mode<synchronous>, transform_indices = @transform_18, window_bounds = array<i64: 64, 128>}, {pipeline_mode = #tpu.pipeline_mode<synchronous>, transform_indices = @transform_19, window_bounds = array<i64: 1, 128>}, {pipeline_mode = #tpu.pipeline_mode<synchronous>, transform_indices = @transform_20, window_bounds = array<i64: 128, 128>}, {pipeline_mode = #tpu.pipeline_mode<synchronous>, transform_indices = @transform_21, window_bounds = array<i64: 1, 128>}, {pipeline_mode = #tpu.pipeline_mode<synchronous>, transform_indices = @transform_22, window_bounds = array<i64: 1, 128>}, {transform_indices = @transform_23, window_bounds = array<i64: 1, 8, 128>}]} {
    %c0 = arith.constant 0 : index
    %c0_0 = arith.constant 0 : index
    %c0_1 = arith.constant 0 : index
    %0 = vector.load %arg1[%c0, %c0_0, %c0_1] : memref<1x8x64xf32, #tpu.memory_space<vmem>>, vector<1x8x64xf32>
    %1 = vector.shape_cast %0 : vector<1x8x64xf32> to vector<8x64xf32>
    %cst = arith.constant dense<0.000000e+00> : vector<8xf32>
    %2 = vector.multi_reduction <add>, %1, %cst [1] : vector<8x64xf32> to vector<8xf32>
    %3 = vector.shape_cast %2 : vector<8xf32> to vector<8x1xf32>
    %cst_2 = arith.constant 6.400000e+01 : f32
    %4 = vector.broadcast %cst_2 : f32 to vector<8x1xf32>
    %5 = arith.divf %3, %4 : vector<8x1xf32>
    %c0_3 = arith.constant 0 : index
    %c0_4 = arith.constant 0 : index
    %6 = vector.load %arg3[%c0_3, %c0_4] : memref<8x2xf32, #tpu.memory_space<vmem>>, vector<8x2xf32>
    %7 = vector.broadcast %5 : vector<8x1xf32> to vector<8x2xf32>
    %8 = arith.mulf %6, %7 : vector<8x2xf32>
    %cst_5 = arith.constant dense<0.000000e+00> : vector<2xf32>
    %9 = vector.multi_reduction <add>, %8, %cst_5 [0] : vector<8x2xf32> to vector<2xf32>
    %10 = vector.shape_cast %9 : vector<2xf32> to vector<1x2xf32>
    %c0_6 = arith.constant 0 : index
    %c0_7 = arith.constant 0 : index
    %11 = vector.load %arg4[%c0_6, %c0_7] : memref<1x2xf32, #tpu.memory_space<vmem>>, vector<1x2xf32>
    %12 = arith.addf %10, %11 : vector<1x2xf32>
    %cst_8 = arith.constant 0.000000e+00 : f32
    %13 = vector.broadcast %cst_8 : f32 to vector<1x2xf32>
    %14 = arith.maximumf %12, %13 : vector<1x2xf32>
    %c0_9 = arith.constant 0 : index
    %c0_10 = arith.constant 0 : index
    %15 = vector.load %arg5[%c0_9, %c0_10] : memref<8x2xf32, #tpu.memory_space<vmem>>, vector<8x2xf32>
    %16 = vector.broadcast %14 : vector<1x2xf32> to vector<8x2xf32>
    %17 = arith.mulf %15, %16 : vector<8x2xf32>
    %cst_11 = arith.constant dense<0.000000e+00> : vector<8xf32>
    %18 = vector.multi_reduction <add>, %17, %cst_11 [1] : vector<8x2xf32> to vector<8xf32>
    %19 = vector.shape_cast %18 : vector<8xf32> to vector<8x1xf32>
    %c0_12 = arith.constant 0 : index
    %c0_13 = arith.constant 0 : index
    %20 = vector.load %arg6[%c0_12, %c0_13] : memref<8x1xf32, #tpu.memory_space<vmem>>, vector<8x1xf32>
    %21 = arith.addf %19, %20 : vector<8x1xf32>
    %22 = arith.negf %21 : vector<8x1xf32>
    %23 = math.exp %22 : vector<8x1xf32>
    %cst_14 = arith.constant 1.000000e+00 : f32
    %24 = vector.broadcast %cst_14 : f32 to vector<8x1xf32>
    %25 = arith.addf %24, %23 : vector<8x1xf32>
    %26 = arith.divf %24, %25 : vector<8x1xf32>
    %27 = vector.broadcast %26 : vector<8x1xf32> to vector<8x64xf32>
    %28 = arith.mulf %1, %27 : vector<8x64xf32>
    %c0_15 = arith.constant 0 : index
    %c0_16 = arith.constant 0 : index
    %29 = vector.load %arg7[%c0_15, %c0_16] : memref<64x128xf32, #tpu.memory_space<vmem>>, vector<64x128xf32>
    %cst_17 = arith.constant dense<0.000000e+00> : vector<8x128xf32>
    %30 = tpu.matmul %28, %29, %cst_17 {dimension_numbers = #tpu.dot_dimension_numbers<[1], [0], [0], [1], [0, 0, 1, 1], [], []>} : vector<8x64xf32>, vector<64x128xf32>, vector<8x128xf32> -> vector<8x128xf32>
    %cst_18 = arith.constant 0.000000e+00 : f32
    %31 = vector.broadcast %cst_18 : f32 to vector<8x128xf32>
    %32 = arith.maximumf %30, %31 : vector<8x128xf32>
    %c0_19 = arith.constant 0 : index
    %c0_20 = arith.constant 0 : index
    %33 = vector.load %arg8[%c0_19, %c0_20] : memref<128x128xf32, #tpu.memory_space<vmem>>, vector<128x128xf32>
    %cst_21 = arith.constant dense<0.000000e+00> : vector<8x128xf32>
    %34 = tpu.matmul %32, %33, %cst_21 {dimension_numbers = #tpu.dot_dimension_numbers<[1], [0], [0], [1], [0, 0, 1, 1], [], []>} : vector<8x128xf32>, vector<128x128xf32>, vector<8x128xf32> -> vector<8x128xf32>
    %cst_22 = arith.constant 0.000000e+00 : f32
    %35 = vector.broadcast %cst_22 : f32 to vector<8x128xf32>
    %36 = arith.maximumf %34, %35 : vector<8x128xf32>
    %c0_23 = arith.constant 0 : index
    %c0_24 = arith.constant 0 : index
    %37 = vector.load %arg9[%c0_23, %c0_24] : memref<8x8xf32, #tpu.memory_space<vmem>>, vector<8x8xf32>
    %c0_25 = arith.constant 0 : index
    %c0_26 = arith.constant 0 : index
    %38 = vector.load %arg10[%c0_25, %c0_26] : memref<8x8xf32, #tpu.memory_space<vmem>>, vector<8x8xf32>
    %c0_27 = arith.constant 0 : index
    %c0_28 = arith.constant 0 : index
    %39 = vector.load %arg11[%c0_27, %c0_28] : memref<128x128xf32, #tpu.memory_space<vmem>>, vector<128x128xf32>
    %c0_29 = arith.constant 0 : index
    %c0_30 = arith.constant 0 : index
    %40 = vector.load %arg12[%c0_29, %c0_30] : memref<128x128xf32, #tpu.memory_space<vmem>>, vector<128x128xf32>
    %c0_31 = arith.constant 0 : index
    %c0_32 = arith.constant 0 : index
    %41 = vector.load %arg13[%c0_31, %c0_32] : memref<1x128xf32, #tpu.memory_space<vmem>>, vector<1x128xf32>
    %cst_33 = arith.constant dense<0.000000e+00> : vector<8x128xf32>
    %42 = tpu.matmul %36, %39, %cst_33 {dimension_numbers = #tpu.dot_dimension_numbers<[1], [0], [0], [1], [0, 0, 1, 1], [], []>} : vector<8x128xf32>, vector<128x128xf32>, vector<8x128xf32> -> vector<8x128xf32>
    %cst_34 = arith.constant dense<0.000000e+00> : vector<8x128xf32>
    %43 = tpu.matmul %36, %40, %cst_34 {dimension_numbers = #tpu.dot_dimension_numbers<[1], [0], [0], [1], [0, 0, 1, 1], [], []>} : vector<8x128xf32>, vector<128x128xf32>, vector<8x128xf32> -> vector<8x128xf32>
    %cst_35 = arith.constant dense<0.000000e+00> : vector<8x128xf32>
    %44 = tpu.matmul %37, %42, %cst_35 {dimension_numbers = #tpu.dot_dimension_numbers<[1], [0], [0], [1], [0, 0, 1, 1], [], []>} : vector<8x8xf32>, vector<8x128xf32>, vector<8x128xf32> -> vector<8x128xf32>
    %cst_36 = arith.constant dense<0.000000e+00> : vector<8x128xf32>
    %45 = tpu.matmul %38, %43, %cst_36 {dimension_numbers = #tpu.dot_dimension_numbers<[1], [0], [0], [1], [0, 0, 1, 1], [], []>} : vector<8x8xf32>, vector<8x128xf32>, vector<8x128xf32> -> vector<8x128xf32>
    %46 = arith.addf %44, %45 : vector<8x128xf32>
    %47 = vector.broadcast %41 : vector<1x128xf32> to vector<8x128xf32>
    %48 = arith.addf %46, %47 : vector<8x128xf32>
    %cst_37 = arith.constant 0.000000e+00 : f32
    %49 = vector.broadcast %cst_37 : f32 to vector<8x128xf32>
    %50 = arith.maximumf %48, %49 : vector<8x128xf32>
    %c0_38 = arith.constant 0 : index
    %c0_39 = arith.constant 0 : index
    %51 = vector.load %arg14[%c0_38, %c0_39] : memref<8x8xf32, #tpu.memory_space<vmem>>, vector<8x8xf32>
    %c0_40 = arith.constant 0 : index
    %c0_41 = arith.constant 0 : index
    %52 = vector.load %arg15[%c0_40, %c0_41] : memref<8x8xf32, #tpu.memory_space<vmem>>, vector<8x8xf32>
    %c0_42 = arith.constant 0 : index
    %c0_43 = arith.constant 0 : index
    %53 = vector.load %arg16[%c0_42, %c0_43] : memref<128x128xf32, #tpu.memory_space<vmem>>, vector<128x128xf32>
    %c0_44 = arith.constant 0 : index
    %c0_45 = arith.constant 0 : index
    %54 = vector.load %arg17[%c0_44, %c0_45] : memref<128x128xf32, #tpu.memory_space<vmem>>, vector<128x128xf32>
    %c0_46 = arith.constant 0 : index
    %c0_47 = arith.constant 0 : index
    %55 = vector.load %arg18[%c0_46, %c0_47] : memref<1x128xf32, #tpu.memory_space<vmem>>, vector<1x128xf32>
    %cst_48 = arith.constant dense<0.000000e+00> : vector<8x128xf32>
    %56 = tpu.matmul %50, %53, %cst_48 {dimension_numbers = #tpu.dot_dimension_numbers<[1], [0], [0], [1], [0, 0, 1, 1], [], []>} : vector<8x128xf32>, vector<128x128xf32>, vector<8x128xf32> -> vector<8x128xf32>
    %cst_49 = arith.constant dense<0.000000e+00> : vector<8x128xf32>
    %57 = tpu.matmul %50, %54, %cst_49 {dimension_numbers = #tpu.dot_dimension_numbers<[1], [0], [0], [1], [0, 0, 1, 1], [], []>} : vector<8x128xf32>, vector<128x128xf32>, vector<8x128xf32> -> vector<8x128xf32>
    %cst_50 = arith.constant dense<0.000000e+00> : vector<8x128xf32>
    %58 = tpu.matmul %51, %56, %cst_50 {dimension_numbers = #tpu.dot_dimension_numbers<[1], [0], [0], [1], [0, 0, 1, 1], [], []>} : vector<8x8xf32>, vector<8x128xf32>, vector<8x128xf32> -> vector<8x128xf32>
    %cst_51 = arith.constant dense<0.000000e+00> : vector<8x128xf32>
    %59 = tpu.matmul %52, %57, %cst_51 {dimension_numbers = #tpu.dot_dimension_numbers<[1], [0], [0], [1], [0, 0, 1, 1], [], []>} : vector<8x8xf32>, vector<8x128xf32>, vector<8x128xf32> -> vector<8x128xf32>
    %60 = arith.addf %58, %59 : vector<8x128xf32>
    %61 = vector.broadcast %55 : vector<1x128xf32> to vector<8x128xf32>
    %62 = arith.addf %60, %61 : vector<8x128xf32>
    %cst_52 = arith.constant 0.000000e+00 : f32
    %63 = vector.broadcast %cst_52 : f32 to vector<8x128xf32>
    %64 = arith.maximumf %62, %63 : vector<8x128xf32>
    %c0_53 = arith.constant 0 : index
    %c0_54 = arith.constant 0 : index
    %c0_55 = arith.constant 0 : index
    %65 = vector.load %arg2[%c0_53, %c0_54, %c0_55] : memref<1x8x64xf32, #tpu.memory_space<vmem>>, vector<1x8x64xf32>
    %66 = vector.shape_cast %65 : vector<1x8x64xf32> to vector<8x64xf32>
    %c0_56 = arith.constant 0 : index
    %c0_57 = arith.constant 0 : index
    %67 = vector.load %arg19[%c0_56, %c0_57] : memref<64x128xf32, #tpu.memory_space<vmem>>, vector<64x128xf32>
    %cst_58 = arith.constant dense<0.000000e+00> : vector<8x128xf32>
    %68 = tpu.matmul %66, %67, %cst_58 {dimension_numbers = #tpu.dot_dimension_numbers<[1], [0], [0], [1], [0, 0, 1, 1], [], []>} : vector<8x64xf32>, vector<64x128xf32>, vector<8x128xf32> -> vector<8x128xf32>
    %c0_59 = arith.constant 0 : index
    %c0_60 = arith.constant 0 : index
    %69 = vector.load %arg20[%c0_59, %c0_60] : memref<1x128xf32, #tpu.memory_space<vmem>>, vector<1x128xf32>
    %70 = vector.broadcast %69 : vector<1x128xf32> to vector<8x128xf32>
    %71 = arith.addf %68, %70 : vector<8x128xf32>
    %72 = arith.addf %64, %71 : vector<8x128xf32>
    %c0_61 = arith.constant 0 : index
    %c0_62 = arith.constant 0 : index
    %73 = vector.load %arg21[%c0_61, %c0_62] : memref<128x128xf32, #tpu.memory_space<vmem>>, vector<128x128xf32>
    %cst_63 = arith.constant dense<0.000000e+00> : vector<8x128xf32>
    %74 = tpu.matmul %72, %73, %cst_63 {dimension_numbers = #tpu.dot_dimension_numbers<[1], [0], [0], [1], [0, 0, 1, 1], [], []>} : vector<8x128xf32>, vector<128x128xf32>, vector<8x128xf32> -> vector<8x128xf32>
    %75 = arith.subf %72, %74 : vector<8x128xf32>
    %76 = arith.mulf %75, %75 : vector<8x128xf32>
    %c0_64 = arith.constant 0 : index
    %c0_65 = arith.constant 0 : index
    %77 = vector.load %arg21[%c0_64, %c0_65] : memref<128x128xf32, #tpu.memory_space<vmem>>, vector<128x128xf32>
    %cst_66 = arith.constant dense<0.000000e+00> : vector<8x128xf32>
    %78 = tpu.matmul %76, %77, %cst_66 {dimension_numbers = #tpu.dot_dimension_numbers<[1], [0], [0], [1], [0, 0, 1, 1], [], []>} : vector<8x128xf32>, vector<128x128xf32>, vector<8x128xf32> -> vector<8x128xf32>
    %cst_67 = arith.constant 9.99999974E-6 : f32
    %79 = vector.broadcast %cst_67 : f32 to vector<8x128xf32>
    %80 = arith.addf %78, %79 : vector<8x128xf32>
    %81 = math.rsqrt %80 : vector<8x128xf32>
    %82 = arith.mulf %75, %81 : vector<8x128xf32>
    %c0_68 = arith.constant 0 : index
    %c0_69 = arith.constant 0 : index
    %83 = vector.load %arg22[%c0_68, %c0_69] : memref<1x128xf32, #tpu.memory_space<vmem>>, vector<1x128xf32>
    %84 = vector.broadcast %83 : vector<1x128xf32> to vector<8x128xf32>
    %85 = arith.mulf %82, %84 : vector<8x128xf32>
    %c0_70 = arith.constant 0 : index
    %c0_71 = arith.constant 0 : index
    %86 = vector.load %arg23[%c0_70, %c0_71] : memref<1x128xf32, #tpu.memory_space<vmem>>, vector<1x128xf32>
    %87 = vector.broadcast %86 : vector<1x128xf32> to vector<8x128xf32>
    %88 = arith.addf %85, %87 : vector<8x128xf32>
    %cst_72 = arith.constant 0.000000e+00 : f32
    %89 = vector.broadcast %cst_72 : f32 to vector<8x128xf32>
    %90 = arith.maximumf %88, %89 : vector<8x128xf32>
    %c0_73 = arith.constant 0 : index
    %c0_74 = arith.constant 0 : index
    %c0_75 = arith.constant 0 : index
    %91 = vector.load %arg24[%c0_73, %c0_74, %c0_75] : memref<1x8x128xf32, #tpu.memory_space<vmem>>, vector<1x8x128xf32>
    %92 = vector.shape_cast %91 : vector<1x8x128xf32> to vector<8x128xf32>
    %93 = vector.shape_cast %90 : vector<8x128xf32> to vector<1x8x128xf32>
    tpu.vector_store %arg24[%c0_73, %c0_74, %c0_75], %93 {strides = array<i32>} : memref<1x8x128xf32, #tpu.memory_space<vmem>>, vector<1x8x128xf32>,
    return
  }
  func.func @transform_0(%arg0: i32) -> (i32, i32, i32) {
    %c0_i32 = arith.constant 0 : i32
    %c0_i32_0 = arith.constant 0 : i32
    %c0_i32_1 = arith.constant 0 : i32
    return %arg0, %c0_i32, %c0_i32_0 : i32, i32, i32
  }
  func.func @transform_1(%arg0: i32) -> (i32, i32, i32) {
    %c0_i32 = arith.constant 0 : i32
    %c0_i32_0 = arith.constant 0 : i32
    %c0_i32_1 = arith.constant 0 : i32
    return %arg0, %c0_i32, %c0_i32_0 : i32, i32, i32
  }
  func.func @transform_2(%arg0: i32) -> (i32, i32) {
    %c0_i32 = arith.constant 0 : i32
    %c0_i32_0 = arith.constant 0 : i32
    %c0_i32_1 = arith.constant 0 : i32
    return %c0_i32, %c0_i32_0 : i32, i32
  }
  func.func @transform_3(%arg0: i32) -> (i32, i32) {
    %c0_i32 = arith.constant 0 : i32
    %c0_i32_0 = arith.constant 0 : i32
    %c0_i32_1 = arith.constant 0 : i32
    return %c0_i32, %c0_i32_0 : i32, i32
  }
  func.func @transform_4(%arg0: i32) -> (i32, i32) {
    %c0_i32 = arith.constant 0 : i32
    %c0_i32_0 = arith.constant 0 : i32
    %c0_i32_1 = arith.constant 0 : i32
    return %c0_i32, %c0_i32_0 : i32, i32
  }
  func.func @transform_5(%arg0: i32) -> (i32, i32) {
    %c0_i32 = arith.constant 0 : i32
    %c0_i32_0 = arith.constant 0 : i32
    %c0_i32_1 = arith.constant 0 : i32
    return %c0_i32, %c0_i32_0 : i32, i32
  }
  func.func @transform_6(%arg0: i32) -> (i32, i32) {
    %c0_i32 = arith.constant 0 : i32
    %c0_i32_0 = arith.constant 0 : i32
    %c0_i32_1 = arith.constant 0 : i32
    return %c0_i32, %c0_i32_0 : i32, i32
  }
  func.func @transform_7(%arg0: i32) -> (i32, i32) {
    %c0_i32 = arith.constant 0 : i32
    %c0_i32_0 = arith.constant 0 : i32
    %c0_i32_1 = arith.constant 0 : i32
    return %c0_i32, %c0_i32_0 : i32, i32
  }
  func.func @transform_8(%arg0: i32) -> (i32, i32) {
    %c0_i32 = arith.constant 0 : i32
    %c0_i32_0 = arith.constant 0 : i32
    %c0_i32_1 = arith.constant 0 : i32
    return %c0_i32, %c0_i32_0 : i32, i32
  }
  func.func @transform_9(%arg0: i32) -> (i32, i32) {
    %c0_i32 = arith.constant 0 : i32
    %c0_i32_0 = arith.constant 0 : i32
    %c0_i32_1 = arith.constant 0 : i32
    return %c0_i32, %c0_i32_0 : i32, i32
  }
  func.func @transform_10(%arg0: i32) -> (i32, i32) {
    %c0_i32 = arith.constant 0 : i32
    %c0_i32_0 = arith.constant 0 : i32
    %c0_i32_1 = arith.constant 0 : i32
    return %c0_i32, %c0_i32_0 : i32, i32
  }
  func.func @transform_11(%arg0: i32) -> (i32, i32) {
    %c0_i32 = arith.constant 0 : i32
    %c0_i32_0 = arith.constant 0 : i32
    %c0_i32_1 = arith.constant 0 : i32
    return %c0_i32, %c0_i32_0 : i32, i32
  }
  func.func @transform_12(%arg0: i32) -> (i32, i32) {
    %c0_i32 = arith.constant 0 : i32
    %c0_i32_0 = arith.constant 0 : i32
    %c0_i32_1 = arith.constant 0 : i32
    return %c0_i32, %c0_i32_0 : i32, i32
  }
  func.func @transform_13(%arg0: i32) -> (i32, i32) {
    %c0_i32 = arith.constant 0 : i32
    %c0_i32_0 = arith.constant 0 : i32
    %c0_i32_1 = arith.constant 0 : i32
    return %c0_i32, %c0_i32_0 : i32, i32
  }
  func.func @transform_14(%arg0: i32) -> (i32, i32) {
    %c0_i32 = arith.constant 0 : i32
    %c0_i32_0 = arith.constant 0 : i32
    %c0_i32_1 = arith.constant 0 : i32
    return %c0_i32, %c0_i32_0 : i32, i32
  }
  func.func @transform_15(%arg0: i32) -> (i32, i32) {
    %c0_i32 = arith.constant 0 : i32
    %c0_i32_0 = arith.constant 0 : i32
    %c0_i32_1 = arith.constant 0 : i32
    return %c0_i32, %c0_i32_0 : i32, i32
  }
  func.func @transform_16(%arg0: i32) -> (i32, i32) {
    %c0_i32 = arith.constant 0 : i32
    %c0_i32_0 = arith.constant 0 : i32
    %c0_i32_1 = arith.constant 0 : i32
    return %c0_i32, %c0_i32_0 : i32, i32
  }
  func.func @transform_17(%arg0: i32) -> (i32, i32) {
    %c0_i32 = arith.constant 0 : i32
    %c0_i32_0 = arith.constant 0 : i32
    %c0_i32_1 = arith.constant 0 : i32
    return %c0_i32, %c0_i32_0 : i32, i32
  }
  func.func @transform_18(%arg0: i32) -> (i32, i32) {
    %c0_i32 = arith.constant 0 : i32
    %c0_i32_0 = arith.constant 0 : i32
    %c0_i32_1 = arith.constant 0 : i32
    return %c0_i32, %c0_i32_0 : i32, i32
  }
  func.func @transform_19(%arg0: i32) -> (i32, i32) {
    %c0_i32 = arith.constant 0 : i32
    %c0_i32_0 = arith.constant 0 : i32
    %c0_i32_1 = arith.constant 0 : i32
    return %c0_i32, %c0_i32_0 : i32, i32
  }
  func.func @transform_20(%arg0: i32) -> (i32, i32) {
    %c0_i32 = arith.constant 0 : i32
    %c0_i32_0 = arith.constant 0 : i32
    %c0_i32_1 = arith.constant 0 : i32
    return %c0_i32, %c0_i32_0 : i32, i32
  }
  func.func @transform_21(%arg0: i32) -> (i32, i32) {
    %c0_i32 = arith.constant 0 : i32
    %c0_i32_0 = arith.constant 0 : i32
    %c0_i32_1 = arith.constant 0 : i32
    return %c0_i32, %c0_i32_0 : i32, i32
  }
  func.func @transform_22(%arg0: i32) -> (i32, i32) {
    %c0_i32 = arith.constant 0 : i32
    %c0_i32_0 = arith.constant 0 : i32
    %c0_i32_1 = arith.constant 0 : i32
    return %c0_i32, %c0_i32_0 : i32, i32
  }
  func.func @transform_23(%arg0: i32) -> (i32, i32, i32) {
    %c0_i32 = arith.constant 0 : i32
    %c0_i32_0 = arith.constant 0 : i32
    %c0_i32_1 = arith.constant 0 : i32
    return %arg0, %c0_i32, %c0_i32_0 : i32, i32, i32
  }
}

</mosaic_0001>

<llo_original>
// kernel: branch1_block.1
$region0: #{branch1_block.1}
  #allocation0 [shape = 'u32[]', space=smem, size = 0x4, offset = 0x4, fixed_abs, tag = 'smem constant byte address 0x4 - core index']
  #allocation1 [shape = 'u32[144,128]{1,0:T(1,128)}', space=vmem, size = 0x12000, scoped, tag = 'internal scratch']
  %s0 = inlined_call_operand.vmem [shape: f32[2,8,64], index: 0, kind: input, shape index: {}, may-alias: {0,1}]
  %s1 = inlined_call_operand.vmem [shape: f32[2,8,64], index: 1, kind: input, shape index: {}, may-alias: {0,1}]
  %s2 = inlined_call_operand.vmem [shape: f32[8,2], index: 2, kind: input, shape index: {}]
  %s3 = inlined_call_operand.vmem [shape: f32[1,2], index: 3, kind: input, shape index: {}]
  %s4 = inlined_call_operand.vmem [shape: f32[8,2], index: 4, kind: input, shape index: {}]
  %s5 = inlined_call_operand.vmem [shape: f32[8,1], index: 5, kind: input, shape index: {}]
  %s6 = inlined_call_operand.hbm [shape: f32[64,128], index: 6, kind: input, shape index: {}]
  %s7 = inlined_call_operand.vmem [shape: f32[128,128], index: 7, kind: input, shape index: {}]
  %s8 = inlined_call_operand.vmem [shape: f32[8,8], index: 8, kind: input, shape index: {}]
  %s9 = inlined_call_operand.vmem [shape: f32[8,8], index: 9, kind: input, shape index: {}]
  %s10 = inlined_call_operand.hbm [shape: f32[128,128], index: 10, kind: input, shape index: {}]
  %s11 = inlined_call_operand.hbm [shape: f32[128,128], index: 11, kind: input, shape index: {}]
  %s12 = inlined_call_operand.vmem [shape: f32[1,128], index: 12, kind: input, shape index: {}]
  %s13 = inlined_call_operand.vmem [shape: f32[8,8], index: 13, kind: input, shape index: {}]
  %s14 = inlined_call_operand.vmem [shape: f32[8,8], index: 14, kind: input, shape index: {}]
  %s15 = inlined_call_operand.hbm [shape: f32[128,128], index: 15, kind: input, shape index: {}]
  %s16 = inlined_call_operand.hbm [shape: f32[128,128], index: 16, kind: input, shape index: {}]
  %s17 = inlined_call_operand.vmem [shape: f32[1,128], index: 17, kind: input, shape index: {}]
  %s18 = inlined_call_operand.hbm [shape: f32[64,128], index: 18, kind: input, shape index: {}]
  %s19 = inlined_call_operand.vmem [shape: f32[1,128], index: 19, kind: input, shape index: {}]
  %s20 = inlined_call_operand.hbm [shape: f32[128,128], index: 20, kind: input, shape index: {}]
  %s21 = inlined_call_operand.vmem [shape: f32[1,128], index: 21, kind: input, shape index: {}]
  %s22 = inlined_call_operand.vmem [shape: f32[1,128], index: 22, kind: input, shape index: {}]
  %s23 = inlined_call_operand.vmem [shape: f32[2,8,128], index: 23, kind: output, shape index: {}]
  %s24 = sld [smem:[#allocation0]]
  $region153: #{branch1_block.1} parent=0
    _
  %s26 = ssub.s32 1, %s24
  %s27 = scalar_select 0, %s26, %s24
  $region1: #{branch1_block.1} parent=0
    #allocation2 [shape = 'u8[32768]{0}', space=vmem, size = 0x8000, scoped, tag = 'input window, operand 6, single buffered']
    #allocation3 [shape = 's32[2]{0}', space=sflag, size = 0x8, scoped, tag = 'scoped memory for branch1_block.1']
    #allocation4 [shape = 'u8[65536]{0}', space=vmem, size = 0x10000, scoped, tag = 'input window, operand 10, single buffered']
    #allocation5 [shape = 's32[1]{0}', space=sflag, size = 0x4, scoped, tag = 'scoped memory for branch1_block.1']
    #allocation6 [shape = 'u8[65536]{0}', space=vmem, size = 0x10000, scoped, tag = 'input window, operand 11, single buffered']
    #allocation7 [shape = 'u8[65536]{0}', space=vmem, size = 0x10000, scoped, tag = 'input window, operand 15, single buffered']
    #allocation8 [shape = 's32[1]{0}', space=sflag, size = 0x4, scoped, tag = 'scoped memory for branch1_block.1']
    #allocation9 [shape = 'u8[65536]{0}', space=vmem, size = 0x10000, scoped, tag = 'input window, operand 16, single buffered']
    #allocation10 [shape = 'u8[32768]{0}', space=vmem, size = 0x8000, scoped, tag = 'input window, operand 18, single buffered']
    #allocation11 [shape = 's32[1]{0}', space=sflag, size = 0x4, scoped, tag = 'scoped memory for branch1_block.1']
    #allocation12 [shape = 'u8[65536]{0}', space=vmem, size = 0x10000, scoped, tag = 'input window, operand 20, single buffered']
    %28 = vsyncpa [#allocation3], 0
    %29 = vsyncpa [#allocation5], 0
    %30 = vsyncpa [#allocation8], 0
    %31 = vsyncpa [#allocation11], 0
    loop: start=0, step=1, limit=4
    $region2: #{branch1_block.1} parent=1 // loop_pre_header
      _
    $region3: #{branch1_block.1} parent=1 // loop_header
      %s33 = sphi 0, %s37
      %p34 = scmp.ge.s32.totalorder %s33, 4
      %s43 = sphi 0, %s45
      %s46 = sphi 0, %s43
      %s47 = sphi 0, %s46
      %s63 = sphi 0, %s47
      %s69 = sphi 0, %s71
      %s72 = sphi 0, %s69
      %s73 = sphi 0, %s72
      %s89 = sphi 0, %s73
      %s93 = sphi 0, %s93
      %s95 = sphi 0, %s93
      %s96 = sphi 0, %s95
      %s110 = sphi 0, %s96
      %s114 = sphi 0, %s114
      %s116 = sphi 0, %s114
      %s117 = sphi 0, %s116
      %s131 = sphi 0, %s117
      %s135 = sphi 0, %s135
      %s137 = sphi 0, %s135
      %s138 = sphi 0, %s137
      %s152 = sphi 0, %s138
      %s156 = sphi 0, %s156
      %s158 = sphi 0, %s156
      %s159 = sphi 0, %s158
      %s173 = sphi 0, %s159
      %s177 = sphi 0, %s177
      %s179 = sphi 0, %s177
      %s180 = sphi 0, %s179
      %s194 = sphi 0, %s180
      %s198 = sphi 0, %s198
      %s200 = sphi 0, %s198
      %s201 = sphi 0, %s200
      %s215 = sphi 0, %s201
      %s219 = sphi 0, %s219
      %s221 = sphi 0, %s219
      %s222 = sphi 0, %s221
      %s236 = sphi 0, %s222
      %s240 = sphi 0, %s240
      %s242 = sphi 0, %s240
      %s243 = sphi 0, %s242
      %s257 = sphi 0, %s243
      %s261 = sphi 0, %s261
      %s263 = sphi 0, %s261
      %s264 = sphi 0, %s263
      %s278 = sphi 0, %s264
      %s282 = sphi 0, %s282
      %s284 = sphi 0, %s282
      %s285 = sphi 0, %s284
      %s299 = sphi 0, %s285
      %s303 = sphi 0, %s303
      %s305 = sphi 0, %s303
      %s306 = sphi 0, %s305
      %s320 = sphi 0, %s306
      %s324 = sphi 0, %s324
      %s326 = sphi 0, %s324
      %s327 = sphi 0, %s326
      %s341 = sphi 0, %s327
      %s345 = sphi 0, %s345
      %s347 = sphi 0, %s345
      %s348 = sphi 0, %s347
      %s362 = sphi 0, %s348
      %s366 = sphi 0, %s366
      %s368 = sphi 0, %s366
      %s369 = sphi 0, %s368
      %s383 = sphi 0, %s369
      %s387 = sphi 0, %s387
      %s389 = sphi 0, %s387
      %s390 = sphi 0, %s389
      %s404 = sphi 0, %s390
      %s408 = sphi 0, %s408
      %s410 = sphi 0, %s408
      %s411 = sphi 0, %s410
      %s425 = sphi 0, %s411
      %s429 = sphi 0, %s429
      %s431 = sphi 0, %s429
      %s432 = sphi 0, %s431
      %s446 = sphi 0, %s432
      %s450 = sphi 0, %s450
      %s452 = sphi 0, %s450
      %s453 = sphi 0, %s452
      %s467 = sphi 0, %s453
      %s471 = sphi 0, %s471
      %s473 = sphi 0, %s471
      %s474 = sphi 0, %s473
      %s488 = sphi 0, %s474
      %s492 = sphi 0, %s492
      %s494 = sphi 0, %s492
      %s495 = sphi 0, %s494
      %s509 = sphi 0, %s495
      %s513 = sphi 0, %s513
      %s515 = sphi 0, %s513
      %s516 = sphi 0, %s515
      %s530 = sphi 0, %s516
      %s536 = sphi 0, %s538
      %s539 = sphi 0, %s536
      %s540 = sphi 0, %s539
      %s556 = sphi 0, %s540
    $region4: #{branch1_block.1} parent=1 // loop_header_branch
      %36 = sbr.rel (%p34) target = $region8
    $region5: #{branch1_block.1} parent=1 // loop_body
      %s38 = ssub.s32 %s33, 1
      %s39 = ssub.s32 %s33, 2
      %s40 = sadd.s32 %s33, 1
      %s41 = ssub.s32 %s33, %s40
      %p42 = scmp.eq.s32.totalorder %s41, 0
      %s44 = sadd.s32 %s43, 1
      %s45 = scalar_select %p42, %s43, %s44
      %p48 = pneg %p42
      %p49 = scmp.eq.s32.totalorder %s33, 1
      %p50 = por %p48, %p49
      %p51 = scmp.ne.s32.totalorder %s43, %s46
      %p52 = scmp.eq.s32.totalorder %s33, 0
      %p53 = por %p51, %p52
      %p54 = scmp.ne.s32.totalorder %s43, %s46
      %p55 = scmp.eq.s32.totalorder %s38, 1
      %p56 = por %p54, %p55
      %p57 = scmp.ne.s32.totalorder %s46, %s47
      %p58 = scmp.eq.s32.totalorder %s38, 0
      %p59 = por %p57, %p58
      %p60 = scmp.ne.s32.totalorder %s46, %s47
      %p61 = scmp.eq.s32.totalorder %s39, 1
      %p62 = por %p60, %p61
      %p64 = scmp.ne.s32.totalorder %s47, %s63
      %p65 = scmp.eq.s32.totalorder %s39, 0
      %p66 = por %p64, %p65
      %s67 = ssub.s32 %s33, %s40
      %p68 = scmp.eq.s32.totalorder %s67, 0
      %s70 = sadd.s32 %s69, 1
      %s71 = scalar_select %p68, %s69, %s70
      %p74 = pneg %p68
      %p75 = scmp.eq.s32.totalorder %s33, 1
      %p76 = por %p74, %p75
      %p77 = scmp.ne.s32.totalorder %s69, %s72
      %p78 = scmp.eq.s32.totalorder %s33, 0
      %p79 = por %p77, %p78
      %p80 = scmp.ne.s32.totalorder %s69, %s72
      %p81 = scmp.eq.s32.totalorder %s38, 1
      %p82 = por %p80, %p81
      %p83 = scmp.ne.s32.totalorder %s72, %s73
      %p84 = scmp.eq.s32.totalorder %s38, 0
      %p85 = por %p83, %p84
      %p86 = scmp.ne.s32.totalorder %s72, %s73
      %p87 = scmp.eq.s32.totalorder %s39, 1
      %p88 = por %p86, %p87
      %p90 = scmp.ne.s32.totalorder %s73, %s89
      %p91 = scmp.eq.s32.totalorder %s39, 0
      %p92 = por %p90, %p91
      %s94 = sadd.s32 %s93, 1
      %p97 = scmp.eq.s32.totalorder %s33, 1
      %p98 = scmp.ne.s32.totalorder %s93, %s95
      %p99 = scmp.eq.s32.totalorder %s33, 0
      %p100 = por %p98, %p99
      %p101 = scmp.ne.s32.totalorder %s93, %s95
      %p102 = scmp.eq.s32.totalorder %s38, 1
      %p103 = por %p101, %p102
      %p104 = scmp.ne.s32.totalorder %s95, %s96
      %p105 = scmp.eq.s32.totalorder %s38, 0
      %p106 = por %p104, %p105
      %p107 = scmp.ne.s32.totalorder %s95, %s96
      %p108 = scmp.eq.s32.totalorder %s39, 1
      %p109 = por %p107, %p108
      %p111 = scmp.ne.s32.totalorder %s96, %s110
      %p112 = scmp.eq.s32.totalorder %s39, 0
      %p113 = por %p111, %p112
      %s115 = sadd.s32 %s114, 1
      %p118 = scmp.eq.s32.totalorder %s33, 1
      %p119 = scmp.ne.s32.totalorder %s114, %s116
      %p120 = scmp.eq.s32.totalorder %s33, 0
      %p121 = por %p119, %p120
      %p122 = scmp.ne.s32.totalorder %s114, %s116
      %p123 = scmp.eq.s32.totalorder %s38, 1
      %p124 = por %p122, %p123
      %p125 = scmp.ne.s32.totalorder %s116, %s117
      %p126 = scmp.eq.s32.totalorder %s38, 0
      %p127 = por %p125, %p126
      %p128 = scmp.ne.s32.totalorder %s116, %s117
      %p129 = scmp.eq.s32.totalorder %s39, 1
      %p130 = por %p128, %p129
      %p132 = scmp.ne.s32.totalorder %s117, %s131
      %p133 = scmp.eq.s32.totalorder %s39, 0
      %p134 = por %p132, %p133
      %s136 = sadd.s32 %s135, 1
      %p139 = scmp.eq.s32.totalorder %s33, 1
      %p140 = scmp.ne.s32.totalorder %s135, %s137
      %p141 = scmp.eq.s32.totalorder %s33, 0
      %p142 = por %p140, %p141
      %p143 = scmp.ne.s32.totalorder %s135, %s137
      %p144 = scmp.eq.s32.totalorder %s38, 1
      %p145 = por %p143, %p144
      %p146 = scmp.ne.s32.totalorder %s137, %s138
      %p147 = scmp.eq.s32.totalorder %s38, 0
      %p148 = por %p146, %p147
      %p149 = scmp.ne.s32.totalorder %s137, %s138
      %p150 = scmp.eq.s32.totalorder %s39, 1
      %p151 = por %p149, %p150
      %p153 = scmp.ne.s32.totalorder %s138, %s152
      %p154 = scmp.eq.s32.totalorder %s39, 0
      %p155 = por %p153, %p154
      %s157 = sadd.s32 %s156, 1
      %p160 = scmp.eq.s32.totalorder %s33, 1
      %p161 = scmp.ne.s32.totalorder %s156, %s158
      %p162 = scmp.eq.s32.totalorder %s33, 0
      %p163 = por %p161, %p162
      %p164 = scmp.ne.s32.totalorder %s156, %s158
      %p165 = scmp.eq.s32.totalorder %s38, 1
      %p166 = por %p164, %p165
      %p167 = scmp.ne.s32.totalorder %s158, %s159
      %p168 = scmp.eq.s32.totalorder %s38, 0
      %p169 = por %p167, %p168
      %p170 = scmp.ne.s32.totalorder %s158, %s159
      %p171 = scmp.eq.s32.totalorder %s39, 1
      %p172 = por %p170, %p171
      %p174 = scmp.ne.s32.totalorder %s159, %s173
      %p175 = scmp.eq.s32.totalorder %s39, 0
      %p176 = por %p174, %p175
      %s178 = sadd.s32 %s177, 1
      %p181 = scmp.eq.s32.totalorder %s33, 1
      %p182 = scmp.ne.s32.totalorder %s177, %s179
      %p183 = scmp.eq.s32.totalorder %s33, 0
      %p184 = por %p182, %p183
      %p185 = scmp.ne.s32.totalorder %s177, %s179
      %p186 = scmp.eq.s32.totalorder %s38, 1
      %p187 = por %p185, %p186
      %p188 = scmp.ne.s32.totalorder %s179, %s180
      %p189 = scmp.eq.s32.totalorder %s38, 0
      %p190 = por %p188, %p189
      %p191 = scmp.ne.s32.totalorder %s179, %s180
      %p192 = scmp.eq.s32.totalorder %s39, 1
      %p193 = por %p191, %p192
      %p195 = scmp.ne.s32.totalorder %s180, %s194
      %p196 = scmp.eq.s32.totalorder %s39, 0
      %p197 = por %p195, %p196
      %s199 = sadd.s32 %s198, 1
      %p202 = scmp.eq.s32.totalorder %s33, 1
      %p203 = scmp.ne.s32.totalorder %s198, %s200
      %p204 = scmp.eq.s32.totalorder %s33, 0
      %p205 = por %p203, %p204
      %p206 = scmp.ne.s32.totalorder %s198, %s200
      %p207 = scmp.eq.s32.totalorder %s38, 1
      %p208 = por %p206, %p207
      %p209 = scmp.ne.s32.totalorder %s200, %s201
      %p210 = scmp.eq.s32.totalorder %s38, 0
      %p211 = por %p209, %p210
      %p212 = scmp.ne.s32.totalorder %s200, %s201
      %p213 = scmp.eq.s32.totalorder %s39, 1
      %p214 = por %p212, %p213
      %p216 = scmp.ne.s32.totalorder %s201, %s215
      %p217 = scmp.eq.s32.totalorder %s39, 0
      %p218 = por %p216, %p217
      %s220 = sadd.s32 %s219, 1
      %p223 = scmp.eq.s32.totalorder %s33, 1
      %p224 = scmp.ne.s32.totalorder %s219, %s221
      %p225 = scmp.eq.s32.totalorder %s33, 0
      %p226 = por %p224, %p225
      %p227 = scmp.ne.s32.totalorder %s219, %s221
      %p228 = scmp.eq.s32.totalorder %s38, 1
      %p229 = por %p227, %p228
      %p230 = scmp.ne.s32.totalorder %s221, %s222
      %p231 = scmp.eq.s32.totalorder %s38, 0
      %p232 = por %p230, %p231
      %p233 = scmp.ne.s32.totalorder %s221, %s222
      %p234 = scmp.eq.s32.totalorder %s39, 1
      %p235 = por %p233, %p234
      %p237 = scmp.ne.s32.totalorder %s222, %s236
      %p238 = scmp.eq.s32.totalorder %s39, 0
      %p239 = por %p237, %p238
      %s241 = sadd.s32 %s240, 1
      %p244 = scmp.eq.s32.totalorder %s33, 1
      %p245 = scmp.ne.s32.totalorder %s240, %s242
      %p246 = scmp.eq.s32.totalorder %s33, 0
      %p247 = por %p245, %p246
      %p248 = scmp.ne.s32.totalorder %s240, %s242
      %p249 = scmp.eq.s32.totalorder %s38, 1
      %p250 = por %p248, %p249
      %p251 = scmp.ne.s32.totalorder %s242, %s243
      %p252 = scmp.eq.s32.totalorder %s38, 0
      %p253 = por %p251, %p252
      %p254 = scmp.ne.s32.totalorder %s242, %s243
      %p255 = scmp.eq.s32.totalorder %s39, 1
      %p256 = por %p254, %p255
      %p258 = scmp.ne.s32.totalorder %s243, %s257
      %p259 = scmp.eq.s32.totalorder %s39, 0
      %p260 = por %p258, %p259
      %s262 = sadd.s32 %s261, 1
      %p265 = scmp.eq.s32.totalorder %s33, 1
      %p266 = scmp.ne.s32.totalorder %s261, %s263
      %p267 = scmp.eq.s32.totalorder %s33, 0
      %p268 = por %p266, %p267
      %p269 = scmp.ne.s32.totalorder %s261, %s263
      %p270 = scmp.eq.s32.totalorder %s38, 1
      %p271 = por %p269, %p270
      %p272 = scmp.ne.s32.totalorder %s263, %s264
      %p273 = scmp.eq.s32.totalorder %s38, 0
      %p274 = por %p272, %p273
      %p275 = scmp.ne.s32.totalorder %s263, %s264
      %p276 = scmp.eq.s32.totalorder %s39, 1
      %p277 = por %p275, %p276
      %p279 = scmp.ne.s32.totalorder %s264, %s278
      %p280 = scmp.eq.s32.totalorder %s39, 0
      %p281 = por %p279, %p280
      %s283 = sadd.s32 %s282, 1
      %p286 = scmp.eq.s32.totalorder %s33, 1
      %p287 = scmp.ne.s32.totalorder %s282, %s284
      %p288 = scmp.eq.s32.totalorder %s33, 0
      %p289 = por %p287, %p288
      %p290 = scmp.ne.s32.totalorder %s282, %s284
      %p291 = scmp.eq.s32.totalorder %s38, 1
      %p292 = por %p290, %p291
      %p293 = scmp.ne.s32.totalorder %s284, %s285
      %p294 = scmp.eq.s32.totalorder %s38, 0
      %p295 = por %p293, %p294
      %p296 = scmp.ne.s32.totalorder %s284, %s285
      %p297 = scmp.eq.s32.totalorder %s39, 1
      %p298 = por %p296, %p297
      %p300 = scmp.ne.s32.totalorder %s285, %s299
      %p301 = scmp.eq.s32.totalorder %s39, 0
      %p302 = por %p300, %p301
      %s304 = sadd.s32 %s303, 1
      %p307 = scmp.eq.s32.totalorder %s33, 1
      %p308 = scmp.ne.s32.totalorder %s303, %s305
      %p309 = scmp.eq.s32.totalorder %s33, 0
      %p310 = por %p308, %p309
      %p311 = scmp.ne.s32.totalorder %s303, %s305
      %p312 = scmp.eq.s32.totalorder %s38, 1
      %p313 = por %p311, %p312
      %p314 = scmp.ne.s32.totalorder %s305, %s306
      %p315 = scmp.eq.s32.totalorder %s38, 0
      %p316 = por %p314, %p315
      %p317 = scmp.ne.s32.totalorder %s305, %s306
      %p318 = scmp.eq.s32.totalorder %s39, 1
      %p319 = por %p317, %p318
      %p321 = scmp.ne.s32.totalorder %s306, %s320
      %p322 = scmp.eq.s32.totalorder %s39, 0
      %p323 = por %p321, %p322
      %s325 = sadd.s32 %s324, 1
      %p328 = scmp.eq.s32.totalorder %s33, 1
      %p329 = scmp.ne.s32.totalorder %s324, %s326
      %p330 = scmp.eq.s32.totalorder %s33, 0
      %p331 = por %p329, %p330
      %p332 = scmp.ne.s32.totalorder %s324, %s326
      %p333 = scmp.eq.s32.totalorder %s38, 1
      %p334 = por %p332, %p333
      %p335 = scmp.ne.s32.totalorder %s326, %s327
      %p336 = scmp.eq.s32.totalorder %s38, 0
      %p337 = por %p335, %p336
      %p338 = scmp.ne.s32.totalorder %s326, %s327
      %p339 = scmp.eq.s32.totalorder %s39, 1
      %p340 = por %p338, %p339
      %p342 = scmp.ne.s32.totalorder %s327, %s341
      %p343 = scmp.eq.s32.totalorder %s39, 0
      %p344 = por %p342, %p343
      %s346 = sadd.s32 %s345, 1
      %p349 = scmp.eq.s32.totalorder %s33, 1
      %p350 = scmp.ne.s32.totalorder %s345, %s347
      %p351 = scmp.eq.s32.totalorder %s33, 0
      %p352 = por %p350, %p351
      %p353 = scmp.ne.s32.totalorder %s345, %s347
      %p354 = scmp.eq.s32.totalorder %s38, 1
      %p355 = por %p353, %p354
      %p356 = scmp.ne.s32.totalorder %s347, %s348
      %p357 = scmp.eq.s32.totalorder %s38, 0
      %p358 = por %p356, %p357
      %p359 = scmp.ne.s32.totalorder %s347, %s348
      %p360 = scmp.eq.s32.totalorder %s39, 1
      %p361 = por %p359, %p360
      %p363 = scmp.ne.s32.totalorder %s348, %s362
      %p364 = scmp.eq.s32.totalorder %s39, 0
      %p365 = por %p363, %p364
      %s367 = sadd.s32 %s366, 1
      %p370 = scmp.eq.s32.totalorder %s33, 1
      %p371 = scmp.ne.s32.totalorder %s366, %s368
      %p372 = scmp.eq.s32.totalorder %s33, 0
      %p373 = por %p371, %p372
      %p374 = scmp.ne.s32.totalorder %s366, %s368
      %p375 = scmp.eq.s32.totalorder %s38, 1
      %p376 = por %p374, %p375
      %p377 = scmp.ne.s32.totalorder %s368, %s369
      %p378 = scmp.eq.s32.totalorder %s38, 0
      %p379 = por %p377, %p378
      %p380 = scmp.ne.s32.totalorder %s368, %s369
      %p381 = scmp.eq.s32.totalorder %s39, 1
      %p382 = por %p380, %p381
      %p384 = scmp.ne.s32.totalorder %s369, %s383
      %p385 = scmp.eq.s32.totalorder %s39, 0
      %p386 = por %p384, %p385
      %s388 = sadd.s32 %s387, 1
      %p391 = scmp.eq.s32.totalorder %s33, 1
      %p392 = scmp.ne.s32.totalorder %s387, %s389
      %p393 = scmp.eq.s32.totalorder %s33, 0
      %p394 = por %p392, %p393
      %p395 = scmp.ne.s32.totalorder %s387, %s389
      %p396 = scmp.eq.s32.totalorder %s38, 1
      %p397 = por %p395, %p396
      %p398 = scmp.ne.s32.totalorder %s389, %s390
      %p399 = scmp.eq.s32.totalorder %s38, 0
      %p400 = por %p398, %p399
      %p401 = scmp.ne.s32.totalorder %s389, %s390
      %p402 = scmp.eq.s32.totalorder %s39, 1
      %p403 = por %p401, %p402
      %p405 = scmp.ne.s32.totalorder %s390, %s404
      %p406 = scmp.eq.s32.totalorder %s39, 0
      %p407 = por %p405, %p406
      %s409 = sadd.s32 %s408, 1
      %p412 = scmp.eq.s32.totalorder %s33, 1
      %p413 = scmp.ne.s32.totalorder %s408, %s410
      %p414 = scmp.eq.s32.totalorder %s33, 0
      %p415 = por %p413, %p414
      %p416 = scmp.ne.s32.totalorder %s408, %s410
      %p417 = scmp.eq.s32.totalorder %s38, 1
      %p418 = por %p416, %p417
      %p419 = scmp.ne.s32.totalorder %s410, %s411
      %p420 = scmp.eq.s32.totalorder %s38, 0
      %p421 = por %p419, %p420
      %p422 = scmp.ne.s32.totalorder %s410, %s411
      %p423 = scmp.eq.s32.totalorder %s39, 1
      %p424 = por %p422, %p423
      %p426 = scmp.ne.s32.totalorder %s411, %s425
      %p427 = scmp.eq.s32.totalorder %s39, 0
      %p428 = por %p426, %p427
      %s430 = sadd.s32 %s429, 1
      %p433 = scmp.eq.s32.totalorder %s33, 1
      %p434 = scmp.ne.s32.totalorder %s429, %s431
      %p435 = scmp.eq.s32.totalorder %s33, 0
      %p436 = por %p434, %p435
      %p437 = scmp.ne.s32.totalorder %s429, %s431
      %p438 = scmp.eq.s32.totalorder %s38, 1
      %p439 = por %p437, %p438
      %p440 = scmp.ne.s32.totalorder %s431, %s432
      %p441 = scmp.eq.s32.totalorder %s38, 0
      %p442 = por %p440, %p441
      %p443 = scmp.ne.s32.totalorder %s431, %s432
      %p444 = scmp.eq.s32.totalorder %s39, 1
      %p445 = por %p443, %p444
      %p447 = scmp.ne.s32.totalorder %s432, %s446
      %p448 = scmp.eq.s32.totalorder %s39, 0
      %p449 = por %p447, %p448
      %s451 = sadd.s32 %s450, 1
      %p454 = scmp.eq.s32.totalorder %s33, 1
      %p455 = scmp.ne.s32.totalorder %s450, %s452
      %p456 = scmp.eq.s32.totalorder %s33, 0
      %p457 = por %p455, %p456
      %p458 = scmp.ne.s32.totalorder %s450, %s452
      %p459 = scmp.eq.s32.totalorder %s38, 1
      %p460 = por %p458, %p459
      %p461 = scmp.ne.s32.totalorder %s452, %s453
      %p462 = scmp.eq.s32.totalorder %s38, 0
      %p463 = por %p461, %p462
      %p464 = scmp.ne.s32.totalorder %s452, %s453
      %p465 = scmp.eq.s32.totalorder %s39, 1
      %p466 = por %p464, %p465
      %p468 = scmp.ne.s32.totalorder %s453, %s467
      %p469 = scmp.eq.s32.totalorder %s39, 0
      %p470 = por %p468, %p469
      %s472 = sadd.s32 %s471, 1
      %p475 = scmp.eq.s32.totalorder %s33, 1
      %p476 = scmp.ne.s32.totalorder %s471, %s473
      %p477 = scmp.eq.s32.totalorder %s33, 0
      %p478 = por %p476, %p477
      %p479 = scmp.ne.s32.totalorder %s471, %s473
      %p480 = scmp.eq.s32.totalorder %s38, 1
      %p481 = por %p479, %p480
      %p482 = scmp.ne.s32.totalorder %s473, %s474
      %p483 = scmp.eq.s32.totalorder %s38, 0
      %p484 = por %p482, %p483
      %p485 = scmp.ne.s32.totalorder %s473, %s474
      %p486 = scmp.eq.s32.totalorder %s39, 1
      %p487 = por %p485, %p486
      %p489 = scmp.ne.s32.totalorder %s474, %s488
      %p490 = scmp.eq.s32.totalorder %s39, 0
      %p491 = por %p489, %p490
      %s493 = sadd.s32 %s492, 1
      %p496 = scmp.eq.s32.totalorder %s33, 1
      %p497 = scmp.ne.s32.totalorder %s492, %s494
      %p498 = scmp.eq.s32.totalorder %s33, 0
      %p499 = por %p497, %p498
      %p500 = scmp.ne.s32.totalorder %s492, %s494
      %p501 = scmp.eq.s32.totalorder %s38, 1
      %p502 = por %p500, %p501
      %p503 = scmp.ne.s32.totalorder %s494, %s495
      %p504 = scmp.eq.s32.totalorder %s38, 0
      %p505 = por %p503, %p504
      %p506 = scmp.ne.s32.totalorder %s494, %s495
      %p507 = scmp.eq.s32.totalorder %s39, 1
      %p508 = por %p506, %p507
      %p510 = scmp.ne.s32.totalorder %s495, %s509
      %p511 = scmp.eq.s32.totalorder %s39, 0
      %p512 = por %p510, %p511
      %s514 = sadd.s32 %s513, 1
      %p517 = scmp.eq.s32.totalorder %s33, 1
      %p518 = scmp.ne.s32.totalorder %s513, %s515
      %p519 = scmp.eq.s32.totalorder %s33, 0
      %p520 = por %p518, %p519
      %p521 = scmp.ne.s32.totalorder %s513, %s515
      %p522 = scmp.eq.s32.totalorder %s38, 1
      %p523 = por %p521, %p522
      %p524 = scmp.ne.s32.totalorder %s515, %s516
      %p525 = scmp.eq.s32.totalorder %s38, 0
      %p526 = por %p524, %p525
      %p527 = scmp.ne.s32.totalorder %s515, %s516
      %p528 = scmp.eq.s32.totalorder %s39, 1
      %p529 = por %p527, %p528
      %p531 = scmp.ne.s32.totalorder %s516, %s530
      %p532 = scmp.eq.s32.totalorder %s39, 0
      %p533 = por %p531, %p532
      %s534 = ssub.s32 %s33, %s40
      %p535 = scmp.eq.s32.totalorder %s534, 0
      %s537 = sadd.s32 %s536, 1
      %s538 = scalar_select %p535, %s536, %s537
      %p541 = pneg %p535
      %p542 = scmp.eq.s32.totalorder %s33, 1
      %p543 = por %p541, %p542
      %p544 = scmp.ne.s32.totalorder %s536, %s539
      %p545 = scmp.eq.s32.totalorder %s33, 0
      %p546 = por %p544, %p545
      %p547 = scmp.ne.s32.totalorder %s536, %s539
      %p548 = scmp.eq.s32.totalorder %s38, 1
      %p549 = por %p547, %p548
      %p550 = scmp.ne.s32.totalorder %s539, %s540
      %p551 = scmp.eq.s32.totalorder %s38, 0
      %p552 = por %p550, %p551
      %p553 = scmp.ne.s32.totalorder %s539, %s540
      %p554 = scmp.eq.s32.totalorder %s39, 1
      %p555 = por %p553, %p554
      %p557 = scmp.ne.s32.totalorder %s540, %s556
      %p558 = scmp.eq.s32.totalorder %s39, 0
      %p559 = por %p557, %p558
      %p560 = scmp.le.s32.totalorder 1, %s33
      %p561 = scmp.lt.s32.totalorder %s33, 3
      %p562 = pnand %p560, %p561
      %p563 = pneg %p562
      // Predicated region
      $region9: #{branch1_block.1} parent=5 // pred_check
        _
      $region10: #{branch1_block.1} parent=5 // pred_check_branch
        %565 = sbr.rel (%p562) target = $region12
      $region11: #{branch1_block.1} parent=5 // pred_region
        %s566 = ssub.s32 %s33, 1
        // Predicated region
        $region13: #{branch1_block.1} parent=11 // pred_check
          %p567 = pneg %p106
        $region14: #{branch1_block.1} parent=11 // pred_check_branch
          %569 = sbr.rel (%p567) target = $region16
        $region15: #{branch1_block.1} parent=11 // pred_region
          _
        $region16: #{branch1_block.1} parent=11 // pred_fallthru
          _
        // Predicated region
        $region17: #{branch1_block.1} parent=11 // pred_check
          %p570 = pneg %p127
        $region18: #{branch1_block.1} parent=11 // pred_check_branch
          %572 = sbr.rel (%p570) target = $region20
        $region19: #{branch1_block.1} parent=11 // pred_region
          _
        $region20: #{branch1_block.1} parent=11 // pred_fallthru
          _
        // Predicated region
        $region21: #{branch1_block.1} parent=11 // pred_check
          %p573 = pneg %p148
        $region22: #{branch1_block.1} parent=11 // pred_check_branch
          %575 = sbr.rel (%p573) target = $region24
        $region23: #{branch1_block.1} parent=11 // pred_region
          _
        $region24: #{branch1_block.1} parent=11 // pred_fallthru
          _
        // Predicated region
        $region25: #{branch1_block.1} parent=11 // pred_check
          %p576 = pneg %p169
        $region26: #{branch1_block.1} parent=11 // pred_check_branch
          %578 = sbr.rel (%p576) target = $region28
        $region27: #{branch1_block.1} parent=11 // pred_region
          _
        $region28: #{branch1_block.1} parent=11 // pred_fallthru
          _
        // Predicated region
        $region29: #{branch1_block.1} parent=11 // pred_check
          %p579 = pneg %p190
        $region30: #{branch1_block.1} parent=11 // pred_check_branch
          %581 = sbr.rel (%p579) target = $region32
        $region31: #{branch1_block.1} parent=11 // pred_region
          %s583 = ssub.s32 1024, 1024
          %584 = vsyncadd [#allocation3], %s583
          %s585 = sshll.u32 [#allocation2], 4
          %s586 = int_to_ptr.vmem [resolvable:$true] %s585
          %591 = dma.hbm_to_vmem [thread:$0]  %s6, 1024, %s586, [#allocation3], 128, 128, 8
        $region32: #{branch1_block.1} parent=11 // pred_fallthru
          _
        // Predicated region
        $region33: #{branch1_block.1} parent=11 // pred_check
          %p592 = pneg %p211
        $region34: #{branch1_block.1} parent=11 // pred_check_branch
          %594 = sbr.rel (%p592) target = $region36
        $region35: #{branch1_block.1} parent=11 // pred_region
          _
        $region36: #{branch1_block.1} parent=11 // pred_fallthru
          _
        // Predicated region
        $region37: #{branch1_block.1} parent=11 // pred_check
          %p595 = pneg %p232
        $region38: #{branch1_block.1} parent=11 // pred_check_branch
          %597 = sbr.rel (%p595) target = $region40
        $region39: #{branch1_block.1} parent=11 // pred_region
          _
        $region40: #{branch1_block.1} parent=11 // pred_fallthru
          _
        // Predicated region
        $region41: #{branch1_block.1} parent=11 // pred_check
          %p598 = pneg %p253
        $region42: #{branch1_block.1} parent=11 // pred_check_branch
          %600 = sbr.rel (%p598) target = $region44
        $region43: #{branch1_block.1} parent=11 // pred_region
          _
        $region44: #{branch1_block.1} parent=11 // pred_fallthru
          _
        // Predicated region
        $region45: #{branch1_block.1} parent=11 // pred_check
          %p601 = pneg %p274
        $region46: #{branch1_block.1} parent=11 // pred_check_branch
          %603 = sbr.rel (%p601) target = $region48
        $region47: #{branch1_block.1} parent=11 // pred_region
          %s605 = ssub.s32 2048, 2048
          %606 = vsyncadd [#allocation5], %s605
          %s607 = sshll.u32 [#allocation4], 4
          %s608 = int_to_ptr.vmem [resolvable:$true] %s607
          %613 = dma.hbm_to_vmem [thread:$0]  %s10, 2048, %s608, [#allocation5], 128, 128, 8
        $region48: #{branch1_block.1} parent=11 // pred_fallthru
          _
        // Predicated region
        $region49: #{branch1_block.1} parent=11 // pred_check
          %p614 = pneg %p295
        $region50: #{branch1_block.1} parent=11 // pred_check_branch
          %616 = sbr.rel (%p614) target = $region52
        $region51: #{branch1_block.1} parent=11 // pred_region
          %s618 = ssub.s32 2048, 2048
          %619 = vsyncadd [#allocation5], %s618
          %s620 = sshll.u32 [#allocation6], 4
          %s621 = int_to_ptr.vmem [resolvable:$true] %s620
          %626 = dma.hbm_to_vmem [thread:$0]  %s11, 2048, %s621, [#allocation5], 128, 128, 8
        $region52: #{branch1_block.1} parent=11 // pred_fallthru
          _
        // Predicated region
        $region53: #{branch1_block.1} parent=11 // pred_check
          %p627 = pneg %p316
        $region54: #{branch1_block.1} parent=11 // pred_check_branch
          %629 = sbr.rel (%p627) target = $region56
        $region55: #{branch1_block.1} parent=11 // pred_region
          _
        $region56: #{branch1_block.1} parent=11 // pred_fallthru
          _
        // Predicated region
        $region57: #{branch1_block.1} parent=11 // pred_check
          %p630 = pneg %p337
        $region58: #{branch1_block.1} parent=11 // pred_check_branch
          %632 = sbr.rel (%p630) target = $region60
        $region59: #{branch1_block.1} parent=11 // pred_region
          _
        $region60: #{branch1_block.1} parent=11 // pred_fallthru
          _
        // Predicated region
        $region61: #{branch1_block.1} parent=11 // pred_check
          %p633 = pneg %p358
        $region62: #{branch1_block.1} parent=11 // pred_check_branch
          %635 = sbr.rel (%p633) target = $region64
        $region63: #{branch1_block.1} parent=11 // pred_region
          _
        $region64: #{branch1_block.1} parent=11 // pred_fallthru
          _
        // Predicated region
        $region65: #{branch1_block.1} parent=11 // pred_check
          %p636 = pneg %p379
        $region66: #{branch1_block.1} parent=11 // pred_check_branch
          %638 = sbr.rel (%p636) target = $region68
        $region67: #{branch1_block.1} parent=11 // pred_region
          %s640 = ssub.s32 2048, 2048
          %641 = vsyncadd [#allocation8], %s640
          %s642 = sshll.u32 [#allocation7], 4
          %s643 = int_to_ptr.vmem [resolvable:$true] %s642
          %648 = dma.hbm_to_vmem [thread:$0]  %s15, 2048, %s643, [#allocation8], 128, 128, 8
        $region68: #{branch1_block.1} parent=11 // pred_fallthru
          _
        // Predicated region
        $region69: #{branch1_block.1} parent=11 // pred_check
          %p649 = pneg %p400
        $region70: #{branch1_block.1} parent=11 // pred_check_branch
          %651 = sbr.rel (%p649) target = $region72
        $region71: #{branch1_block.1} parent=11 // pred_region
          %s653 = ssub.s32 2048, 2048
          %654 = vsyncadd [#allocation8], %s653
          %s655 = sshll.u32 [#allocation9], 4
          %s656 = int_to_ptr.vmem [resolvable:$true] %s655
          %661 = dma.hbm_to_vmem [thread:$0]  %s16, 2048, %s656, [#allocation8], 128, 128, 8
        $region72: #{branch1_block.1} parent=11 // pred_fallthru
          _
        // Predicated region
        $region73: #{branch1_block.1} parent=11 // pred_check
          %p662 = pneg %p421
        $region74: #{branch1_block.1} parent=11 // pred_check_branch
          %664 = sbr.rel (%p662) target = $region76
        $region75: #{branch1_block.1} parent=11 // pred_region
          _
        $region76: #{branch1_block.1} parent=11 // pred_fallthru
          _
        // Predicated region
        $region77: #{branch1_block.1} parent=11 // pred_check
          %p665 = pneg %p442
        $region78: #{branch1_block.1} parent=11 // pred_check_branch
          %667 = sbr.rel (%p665) target = $region80
        $region79: #{branch1_block.1} parent=11 // pred_region
          %s669 = ssub.s32 1024, 1024
          %670 = vsyncadd [#allocation11], %s669
          %s671 = sshll.u32 [#allocation10], 4
          %s672 = int_to_ptr.vmem [resolvable:$true] %s671
          %677 = dma.hbm_to_vmem [thread:$0]  %s18, 1024, %s672, [#allocation11], 128, 128, 8
        $region80: #{branch1_block.1} parent=11 // pred_fallthru
          _
        // Predicated region
        $region81: #{branch1_block.1} parent=11 // pred_check
          %p678 = pneg %p463
        $region82: #{branch1_block.1} parent=11 // pred_check_branch
          %680 = sbr.rel (%p678) target = $region84
        $region83: #{branch1_block.1} parent=11 // pred_region
          _
        $region84: #{branch1_block.1} parent=11 // pred_fallthru
          _
        // Predicated region
        $region85: #{branch1_block.1} parent=11 // pred_check
          %p681 = pneg %p484
        $region86: #{branch1_block.1} parent=11 // pred_check_branch
          %683 = sbr.rel (%p681) target = $region88
        $region87: #{branch1_block.1} parent=11 // pred_region
          %s685 = ssub.s32 2048, 2048
          %686 = vsyncadd [#allocation11], %s685
          %s687 = sshll.u32 [#allocation12], 4
          %s688 = int_to_ptr.vmem [resolvable:$true] %s687
          %693 = dma.hbm_to_vmem [thread:$0]  %s20, 2048, %s688, [#allocation11], 128, 128, 8
        $region88: #{branch1_block.1} parent=11 // pred_fallthru
          _
        // Predicated region
        $region89: #{branch1_block.1} parent=11 // pred_check
          %p694 = pneg %p505
        $region90: #{branch1_block.1} parent=11 // pred_check_branch
          %696 = sbr.rel (%p694) target = $region92
        $region91: #{branch1_block.1} parent=11 // pred_region
          _
        $region92: #{branch1_block.1} parent=11 // pred_fallthru
          _
        // Predicated region
        $region93: #{branch1_block.1} parent=11 // pred_check
          %p697 = pneg %p526
        $region94: #{branch1_block.1} parent=11 // pred_check_branch
          %699 = sbr.rel (%p697) target = $region96
        $region95: #{branch1_block.1} parent=11 // pred_region
          _
        $region96: #{branch1_block.1} parent=11 // pred_fallthru
          _
      $region12: #{branch1_block.1} parent=5 // pred_fallthru
        _
      %p700 = scmp.lt.s32.totalorder %s33, 2
      // Predicated region
      $region97: #{branch1_block.1} parent=5 // pred_check
        %p701 = pneg %p700
      $region98: #{branch1_block.1} parent=5 // pred_check_branch
        %703 = sbr.rel (%p701) target = $region100
      $region99: #{branch1_block.1} parent=5 // pred_region
        // Predicated region
        $region101: #{branch1_block.1} parent=99 // pred_check
          %p704 = pneg %p53
        $region102: #{branch1_block.1} parent=99 // pred_check_branch
          %706 = sbr.rel (%p704) target = $region104
        $region103: #{branch1_block.1} parent=99 // pred_region
          %p707 = scmp.lt.s32.totalorder %s33, 1
          %s708 = scalar_select %p707, %s33, 1
          %s709 = smul.addr %s708, 8
          %s710 = scalar_lea.vmem %s0, %s709
        $region104: #{branch1_block.1} parent=99 // pred_fallthru
          _
        // Predicated region
        $region105: #{branch1_block.1} parent=99 // pred_check
          %p711 = pneg %p79
        $region106: #{branch1_block.1} parent=99 // pred_check_branch
          %713 = sbr.rel (%p711) target = $region108
        $region107: #{branch1_block.1} parent=99 // pred_region
          %p714 = scmp.lt.s32.totalorder %s33, 1
          %s715 = scalar_select %p714, %s33, 1
          %s716 = smul.addr %s715, 8
          %s717 = scalar_lea.vmem %s1, %s716
        $region108: #{branch1_block.1} parent=99 // pred_fallthru
          _
      $region100: #{branch1_block.1} parent=5 // pred_fallthru
        _
      %p718 = scmp.le.s32.totalorder 1, %s33
      %p719 = scmp.lt.s32.totalorder %s33, 3
      %p720 = pnand %p718, %p719
      %p721 = pneg %p720
      // Predicated region
      $region109: #{branch1_block.1} parent=5 // pred_check
        _
      $region110: #{branch1_block.1} parent=5 // pred_check_branch
        %723 = sbr.rel (%p720) target = $region112
      $region111: #{branch1_block.1} parent=5 // pred_region
        %s724 = ssub.s32 %s33, 1
        // Predicated region
        $region113: #{branch1_block.1} parent=111 // pred_check
          %p725 = pneg %p190
        $region114: #{branch1_block.1} parent=111 // pred_check_branch
          %727 = sbr.rel (%p725) target = $region116
        $region115: #{branch1_block.1} parent=111 // pred_region
          %728 = dma.done [#allocation3], 1024
        $region116: #{branch1_block.1} parent=111 // pred_fallthru
          _
        // Predicated region
        $region117: #{branch1_block.1} parent=111 // pred_check
          %p729 = pneg %p274
        $region118: #{branch1_block.1} parent=111 // pred_check_branch
          %731 = sbr.rel (%p729) target = $region120
        $region119: #{branch1_block.1} parent=111 // pred_region
          %732 = dma.done [#allocation5], 2048
        $region120: #{branch1_block.1} parent=111 // pred_fallthru
          _
        // Predicated region
        $region121: #{branch1_block.1} parent=111 // pred_check
          %p733 = pneg %p295
        $region122: #{branch1_block.1} parent=111 // pred_check_branch
          %735 = sbr.rel (%p733) target = $region124
        $region123: #{branch1_block.1} parent=111 // pred_region
          %736 = dma.done [#allocation5], 2048
        $region124: #{branch1_block.1} parent=111 // pred_fallthru
          _
        // Predicated region
        $region125: #{branch1_block.1} parent=111 // pred_check
          %p737 = pneg %p379
        $region126: #{branch1_block.1} parent=111 // pred_check_branch
          %739 = sbr.rel (%p737) target = $region128
        $region127: #{branch1_block.1} parent=111 // pred_region
          %740 = dma.done [#allocation8], 2048
        $region128: #{branch1_block.1} parent=111 // pred_fallthru
          _
        // Predicated region
        $region129: #{branch1_block.1} parent=111 // pred_check
          %p741 = pneg %p400
        $region130: #{branch1_block.1} parent=111 // pred_check_branch
          %743 = sbr.rel (%p741) target = $region132
        $region131: #{branch1_block.1} parent=111 // pred_region
          %744 = dma.done [#allocation8], 2048
        $region132: #{branch1_block.1} parent=111 // pred_fallthru
          _
        // Predicated region
        $region133: #{branch1_block.1} parent=111 // pred_check
          %p745 = pneg %p442
        $region134: #{branch1_block.1} parent=111 // pred_check_branch
          %747 = sbr.rel (%p745) target = $region136
        $region135: #{branch1_block.1} parent=111 // pred_region
          %748 = dma.done [#allocation11], 1024
        $region136: #{branch1_block.1} parent=111 // pred_fallthru
          _
        // Predicated region
        $region137: #{branch1_block.1} parent=111 // pred_check
          %p749 = pneg %p484
        $region138: #{branch1_block.1} parent=111 // pred_check_branch
          %751 = sbr.rel (%p749) target = $region140
        $region139: #{branch1_block.1} parent=111 // pred_region
          %752 = dma.done [#allocation11], 2048
        $region140: #{branch1_block.1} parent=111 // pred_fallthru
          _
        %p753 = scmp.lt.s32.totalorder %s38, 1
        %s754 = scalar_select %p753, %s38, 1
        %s755 = smul.addr %s754, 8
        %s756 = scalar_lea.vmem %s0, %s755
        %p757 = pneg %p59
        %p758 = pneg %p56
        %p759 = scmp.lt.s32.totalorder %s38, 1
        %s760 = scalar_select %p759, %s38, 1
        %s761 = smul.addr %s760, 8
        %s762 = scalar_lea.vmem %s1, %s761
        %p763 = pneg %p85
        %p764 = pneg %p82
        %p765 = pneg %p106
        %p766 = pneg %p103
        %p767 = pneg %p127
        %p768 = pneg %p124
        %p769 = pneg %p148
        %p770 = pneg %p145
        %p771 = pneg %p169
        %p772 = pneg %p166
        %p773 = pneg %p190
        %p774 = pneg %p187
        %p775 = pneg %p211
        %p776 = pneg %p208
        %p777 = pneg %p232
        %p778 = pneg %p229
        %p779 = pneg %p253
        %p780 = pneg %p250
        %p781 = pneg %p274
        %p782 = pneg %p271
        %p783 = pneg %p295
        %p784 = pneg %p292
        %p785 = pneg %p316
        %p786 = pneg %p313
        %p787 = pneg %p337
        %p788 = pneg %p334
        %p789 = pneg %p358
        %p790 = pneg %p355
        %p791 = pneg %p379
        %p792 = pneg %p376
        %p793 = pneg %p400
        %p794 = pneg %p397
        %p795 = pneg %p421
        %p796 = pneg %p418
        %p797 = pneg %p442
        %p798 = pneg %p439
        %p799 = pneg %p463
        %p800 = pneg %p460
        %p801 = pneg %p484
        %p802 = pneg %p481
        %p803 = pneg %p505
        %p804 = pneg %p502
        %p805 = pneg %p526
        %p806 = pneg %p523
        %p807 = pneg %p552
        %p808 = pneg %p549
        %p809 = scmp.lt.s32.totalorder %s38, 1
        %s810 = scalar_select %p809, %s38, 1
        %s811 = smul.addr %s810, 8
        %s812 = scalar_lea.vmem %s23, %s811
        %p813 = scmp.lt.s32.totalorder %s38, 1
        %s814 = scalar_select %p813, %s38, 1
        %s815 = smul.addr %s814, 8
        %s816 = scalar_lea.vmem %s0, %s815
        %p817 = scmp.lt.s32.totalorder %s38, 1
        %s818 = scalar_select %p817, %s38, 1
        %s819 = smul.addr %s818, 8
        %s820 = scalar_lea.vmem %s1, %s819
        %p821 = scmp.lt.s32.totalorder %s38, 1
        %s822 = scalar_select %p821, %s38, 1
        %s823 = smul.addr %s822, 8
        %s824 = scalar_lea.vmem %s23, %s823
        %v825 = vld [vmem:[%s816] sm:$0xff]
        %vm826 = vcmask 523264
        %v827 = vsel %vm826, %v825, 0.0
        %828 = vadd.xlane.f32.xlu0 %v827
        %v829 = vpop.xlane.xlu0 %828
        %v830 = vrcp.pop 64.0
        %v831 = vmul.f32 %v829, %v830
        %v832 = vld [vmem:[%s2] sm:$0xff]
        %v833 = vmul.f32 %v832, %v831
        %vm834 = vcmask 15360
        %v835 = vsel %vm834, %v833, 0.0
        %v836 = vrot.slane %v835, 4
        %v837 = vadd.f32 %v835, %v836
        %v838 = vrot.slane %v837, 2
        %v839 = vadd.f32 %v837, %v838
        %v840 = vrot.slane %v839, 1
        %v841 = vadd.f32 %v839, %v840
        %v842 = vld [vmem:[%s3] sm:$0x1]
        %v843 = vadd.f32 %v841, %v842
        %v844 = vmax.f32 %v843, 0.0
        %v845 = vld [vmem:[%s4] sm:$0xff]
        %v846 = vlaneseq
        %v847 = vshrl.u32 %v846, 7
        %v848 = vsub.s32 0, %v847
        %v849 = vrot.slane %v844, %v848
        %v850 = vmul.f32 %v845, %v849
        %v851 = vsel %vm834, %v850, 0.0
        %852 = vadd.xlane.f32.xlu0 %v851
        %v853 = vpop.xlane.xlu0 %852
        %v854 = vld [vmem:[%s5] sm:$0xff]
        %v855 = vadd.f32 %v853, %v854
        %v856 = vxor.u32 %v855, 2147483648
        %v857 = vmul.f32 %v856, 1.442695
        %v858 = vpow.pop %v857
        %v859 = vadd.f32 %v858, 1.0
        %v860 = vrcp.pop %v859
        %v861 = vmul.f32 1.0, %v860
        %863 = vset.pattern.permute.xlu0 0
        %864 = vperm.xlu0 %863, %v861
        %v865 = vpop.permute.xlu0 %864
        %v867 = vmul.f32 %v825, %v865
        %v868 = vld [vmem:[#allocation2] sm:$0xff]
        %v869 = vld [vmem:[#allocation2 + $0x8] sm:$0xff]
        %v870 = vld [vmem:[#allocation2 + $0x10] sm:$0xff]
        %v871 = vld [vmem:[#allocation2 + $0x18] sm:$0xff]
        %v872 = vld [vmem:[#allocation2 + $0x20] sm:$0xff]
        %v873 = vld [vmem:[#allocation2 + $0x28] sm:$0xff]
        %v874 = vld [vmem:[#allocation2 + $0x30] sm:$0xff]
        %v875 = vld [vmem:[#allocation2 + $0x38] sm:$0xff]
        %v877 = vsel %vm826, %v867, 0
        %879 = vmatprep.subr.mxu0 0.0
        %880 = vmatpush1.msra.mxu0 %v868
        %881 = vmatprep.subr.mxu0 0.0
        %882 = vmatpush1.msra.mxu0 %v869
        %883 = vmatprep.subr.mxu0 0.0
        %884 = vmatpush1.msra.mxu0 %v870
        %885 = vmatprep.subr.mxu0 0.0
        %886 = vmatpush1.msra.mxu0 %v871
        %887 = vmatprep.subr.mxu0 0.0
        %888 = vmatpush1.msra.mxu0 %v872
        %889 = vmatprep.subr.mxu0 0.0
        %890 = vmatpush1.msra.mxu0 %v873
        %891 = vmatprep.subr.mxu0 0.0
        %892 = vmatpush1.msra.mxu0 %v874
        %893 = vmatprep.subr.mxu0 0.0
        %894 = vmatpush1.msra.mxu0 %v875
        %895 = vmatprep.subr.mxu0 0.0
        %896 = vmatpush1.msra.mxu0 0.0
        %897 = vmatprep.subr.mxu0 0.0
        %898 = vmatpush1.msra.mxu0 0.0
        %899 = vmatprep.subr.mxu0 0.0
        %900 = vmatpush1.msra.mxu0 0.0
        %901 = vmatprep.subr.mxu0 0.0
        %902 = vmatpush1.msra.mxu0 0.0
        %903 = vmatprep.subr.mxu0 0.0
        %904 = vmatpush1.msra.mxu0 0.0
        %905 = vmatprep.subr.mxu0 0.0
        %906 = vmatpush1.msra.mxu0 0.0
        %907 = vmatprep.subr.mxu0 0.0
        %908 = vmatpush1.msra.mxu0 0.0
        %909 = vmatprep.subr.mxu0 0.0
        %910 = vmatpush1.msra.mxu0 0.0
        %911 = vmatprep.subr.mxu0 0.0
        %912 = vmatpush1.msra.mxu0 0.0
        %913 = vmatprep.subr.mxu0 0.0
        %914 = vmatpush1.msra.mxu0 0.0
        %915 = vmatprep.subr.mxu0 0.0
        %916 = vmatpush1.msra.mxu0 0.0
        %917 = vmatprep.subr.mxu0 0.0
        %918 = vmatpush1.msra.mxu0 0.0
        %919 = vmatprep.subr.mxu0 0.0
        %920 = vmatpush1.msra.mxu0 0.0
        %921 = vmatprep.subr.mxu0 0.0
        %922 = vmatpush1.msra.mxu0 0.0
        %923 = vmatprep.subr.mxu0 0.0
        %924 = vmatpush1.msra.mxu0 0.0
        %925 = vmatprep.subr.mxu0 0.0
        %926 = vmatpush1.msra.mxu0 0.0
        %927 = vmatprep.subr.mxu0 0.0
        %928 = vmatpush1.msra.mxu0 0.0
        %929 = vmatprep.subr.mxu0 0.0
        %930 = vmatpush1.msra.mxu0 0.0
        %931 = vmatprep.subr.mxu0 0.0
        %932 = vmatpush1.msra.mxu0 0.0
        %933 = vmatprep.subr.mxu0 0.0
        %934 = vmatpush1.msra.mxu0 0.0
        %935 = vmatprep.subr.mxu0 0.0
        %936 = vmatpush1.msra.mxu0 0.0
        %937 = vmatprep.subr.mxu0 0.0
        %938 = vmatpush1.msra.mxu0 0.0
        %939 = vmatprep.subr.mxu0 0.0
        %940 = vmatpush1.msra.mxu0 0.0
        %941 = vmatprep.subr.mxu0 0.0
        %942 = vmatpush1.msra.mxu0 0.0
        %943 = vmatprep.mubr.f32.mxu0 0.0
        %944 = vmatmul.mubr.f32.gmra.mrb[0].mxu0 %v877
        %v945 = vpop.f32.mrb[0].mxu0
        %v946 = vadd.f32 0.0, %v945
        %v947 = vpop.f32.mrb[0].mxu0
        %948 = vdwg.mxu0
        %v949 = vmax.f32 %v946, 0.0
        %v950 = vld [vmem:[%s7] sm:$0xff]
        %v951 = vld [vmem:[%s7 + $0x8] sm:$0xff]
        %v952 = vld [vmem:[%s7 + $0x10] sm:$0xff]
        %v953 = vld [vmem:[%s7 + $0x18] sm:$0xff]
        %v954 = vld [vmem:[%s7 + $0x20] sm:$0xff]
        %v955 = vld [vmem:[%s7 + $0x28] sm:$0xff]
        %v956 = vld [vmem:[%s7 + $0x30] sm:$0xff]
        %v957 = vld [vmem:[%s7 + $0x38] sm:$0xff]
        %v958 = vld [vmem:[%s7 + $0x40] sm:$0xff]
        %v959 = vld [vmem:[%s7 + $0x48] sm:$0xff]
        %v960 = vld [vmem:[%s7 + $0x50] sm:$0xff]
        %v961 = vld [vmem:[%s7 + $0x58] sm:$0xff]
        %v962 = vld [vmem:[%s7 + $0x60] sm:$0xff]
        %v963 = vld [vmem:[%s7 + $0x68] sm:$0xff]
        %v964 = vld [vmem:[%s7 + $0x70] sm:$0xff]
        %v965 = vld [vmem:[%s7 + $0x78] sm:$0xff]
        %966 = vmatprep.subr.mxu0 0.0
        %967 = vmatpush1.msra.mxu0 %v950
        %968 = vmatprep.subr.mxu0 0.0
        %969 = vmatpush1.msra.mxu0 %v951
        %970 = vmatprep.subr.mxu0 0.0
        %971 = vmatpush1.msra.mxu0 %v952
        %972 = vmatprep.subr.mxu0 0.0
        %973 = vmatpush1.msra.mxu0 %v953
        %974 = vmatprep.subr.mxu0 0.0
        %975 = vmatpush1.msra.mxu0 %v954
        %976 = vmatprep.subr.mxu0 0.0
        %977 = vmatpush1.msra.mxu0 %v955
        %978 = vmatprep.subr.mxu0 0.0
        %979 = vmatpush1.msra.mxu0 %v956
        %980 = vmatprep.subr.mxu0 0.0
        %981 = vmatpush1.msra.mxu0 %v957
        %982 = vmatprep.subr.mxu0 0.0
        %983 = vmatpush1.msra.mxu0 %v958
        %984 = vmatprep.subr.mxu0 0.0
        %985 = vmatpush1.msra.mxu0 %v959
        %986 = vmatprep.subr.mxu0 0.0
        %987 = vmatpush1.msra.mxu0 %v960
        %988 = vmatprep.subr.mxu0 0.0
        %989 = vmatpush1.msra.mxu0 %v961
        %990 = vmatprep.subr.mxu0 0.0
        %991 = vmatpush1.msra.mxu0 %v962
        %992 = vmatprep.subr.mxu0 0.0
        %993 = vmatpush1.msra.mxu0 %v963
        %994 = vmatprep.subr.mxu0 0.0
        %995 = vmatpush1.msra.mxu0 %v964
        %996 = vmatprep.subr.mxu0 0.0
        %997 = vmatpush1.msra.mxu0 %v965
        %998 = vmatprep.subr.mxu0 0.0
        %999 = vmatpush1.msra.mxu0 0.0
        %1000 = vmatprep.subr.mxu0 0.0
        %1001 = vmatpush1.msra.mxu0 0.0
        %1002 = vmatprep.subr.mxu0 0.0
        %1003 = vmatpush1.msra.mxu0 0.0
        %1004 = vmatprep.subr.mxu0 0.0
        %1005 = vmatpush1.msra.mxu0 0.0
        %1006 = vmatprep.subr.mxu0 0.0
        %1007 = vmatpush1.msra.mxu0 0.0
        %1008 = vmatprep.subr.mxu0 0.0
        %1009 = vmatpush1.msra.mxu0 0.0
        %1010 = vmatprep.subr.mxu0 0.0
        %1011 = vmatpush1.msra.mxu0 0.0
        %1012 = vmatprep.subr.mxu0 0.0
        %1013 = vmatpush1.msra.mxu0 0.0
        %1014 = vmatprep.subr.mxu0 0.0
        %1015 = vmatpush1.msra.mxu0 0.0
        %1016 = vmatprep.subr.mxu0 0.0
        %1017 = vmatpush1.msra.mxu0 0.0
        %1018 = vmatprep.subr.mxu0 0.0
        %1019 = vmatpush1.msra.mxu0 0.0
        %1020 = vmatprep.subr.mxu0 0.0
        %1021 = vmatpush1.msra.mxu0 0.0
        %1022 = vmatprep.subr.mxu0 0.0
        %1023 = vmatpush1.msra.mxu0 0.0
        %1024 = vmatprep.subr.mxu0 0.0
        %1025 = vmatpush1.msra.mxu0 0.0
        %1026 = vmatprep.subr.mxu0 0.0
        %1027 = vmatpush1.msra.mxu0 0.0
        %1028 = vmatprep.subr.mxu0 0.0
        %1029 = vmatpush1.msra.mxu0 0.0
        %1030 = vmatprep.mubr.f32.mxu0 0.0
        %1031 = vmatmul.mubr.f32.gmra.mrb[0].mxu0 %v949
        %v1032 = vpop.f32.mrb[0].mxu0
        %v1033 = vadd.f32 0.0, %v1032
        %v1034 = vpop.f32.mrb[0].mxu0
        %1035 = vdwg.mxu0
        %v1036 = vmax.f32 %v1033, 0.0
        %v1037 = vld [vmem:[%s8] sm:$0xff]
        %v1038 = vld [vmem:[%s9] sm:$0xff]
        %v1039 = vld [vmem:[#allocation4] sm:$0xff]
        %v1040 = vld [vmem:[#allocation4 + $0x8] sm:$0xff]
        %v1041 = vld [vmem:[#allocation4 + $0x10] sm:$0xff]
        %v1042 = vld [vmem:[#allocation4 + $0x18] sm:$0xff]
        %v1043 = vld [vmem:[#allocation4 + $0x20] sm:$0xff]
        %v1044 = vld [vmem:[#allocation4 + $0x28] sm:$0xff]
        %v1045 = vld [vmem:[#allocation4 + $0x30] sm:$0xff]
        %v1046 = vld [vmem:[#allocation4 + $0x38] sm:$0xff]
        %v1047 = vld [vmem:[#allocation4 + $0x40] sm:$0xff]
        %v1048 = vld [vmem:[#allocation4 + $0x48] sm:$0xff]
        %v1049 = vld [vmem:[#allocation4 + $0x50] sm:$0xff]
        %v1050 = vld [vmem:[#allocation4 + $0x58] sm:$0xff]
        %v1051 = vld [vmem:[#allocation4 + $0x60] sm:$0xff]
        %v1052 = vld [vmem:[#allocation4 + $0x68] sm:$0xff]
        %v1053 = vld [vmem:[#allocation4 + $0x70] sm:$0xff]
        %v1054 = vld [vmem:[#allocation4 + $0x78] sm:$0xff]
        %v1055 = vld [vmem:[#allocation6] sm:$0xff]
        %v1056 = vld [vmem:[#allocation6 + $0x8] sm:$0xff]
        %v1057 = vld [vmem:[#allocation6 + $0x10] sm:$0xff]
        %v1058 = vld [vmem:[#allocation6 + $0x18] sm:$0xff]
        %v1059 = vld [vmem:[#allocation6 + $0x20] sm:$0xff]
        %v1060 = vld [vmem:[#allocation6 + $0x28] sm:$0xff]
        %v1061 = vld [vmem:[#allocation6 + $0x30] sm:$0xff]
        %v1062 = vld [vmem:[#allocation6 + $0x38] sm:$0xff]
        %v1063 = vld [vmem:[#allocation6 + $0x40] sm:$0xff]
        %v1064 = vld [vmem:[#allocation6 + $0x48] sm:$0xff]
        %v1065 = vld [vmem:[#allocation6 + $0x50] sm:$0xff]
        %v1066 = vld [vmem:[#allocation6 + $0x58] sm:$0xff]
        %v1067 = vld [vmem:[#allocation6 + $0x60] sm:$0xff]
        %v1068 = vld [vmem:[#allocation6 + $0x68] sm:$0xff]
        %v1069 = vld [vmem:[#allocation6 + $0x70] sm:$0xff]
        %v1070 = vld [vmem:[#allocation6 + $0x78] sm:$0xff]
        %v1071 = vld [vmem:[%s12] sm:$0x1]
        %1072 = vmatprep.subr.mxu0 0.0
        %1073 = vmatpush1.msra.mxu0 %v1039
        %1074 = vmatprep.subr.mxu0 0.0
        %1075 = vmatpush1.msra.mxu0 %v1040
        %1076 = vmatprep.subr.mxu0 0.0
        %1077 = vmatpush1.msra.mxu0 %v1041
        %1078 = vmatprep.subr.mxu0 0.0
        %1079 = vmatpush1.msra.mxu0 %v1042
        %1080 = vmatprep.subr.mxu0 0.0
        %1081 = vmatpush1.msra.mxu0 %v1043
        %1082 = vmatprep.subr.mxu0 0.0
        %1083 = vmatpush1.msra.mxu0 %v1044
        %1084 = vmatprep.subr.mxu0 0.0
        %1085 = vmatpush1.msra.mxu0 %v1045
        %1086 = vmatprep.subr.mxu0 0.0
        %1087 = vmatpush1.msra.mxu0 %v1046
        %1088 = vmatprep.subr.mxu0 0.0
        %1089 = vmatpush1.msra.mxu0 %v1047
        %1090 = vmatprep.subr.mxu0 0.0
        %1091 = vmatpush1.msra.mxu0 %v1048
        %1092 = vmatprep.subr.mxu0 0.0
        %1093 = vmatpush1.msra.mxu0 %v1049
        %1094 = vmatprep.subr.mxu0 0.0
        %1095 = vmatpush1.msra.mxu0 %v1050
        %1096 = vmatprep.subr.mxu0 0.0
        %1097 = vmatpush1.msra.mxu0 %v1051
        %1098 = vmatprep.subr.mxu0 0.0
        %1099 = vmatpush1.msra.mxu0 %v1052
        %1100 = vmatprep.subr.mxu0 0.0
        %1101 = vmatpush1.msra.mxu0 %v1053
        %1102 = vmatprep.subr.mxu0 0.0
        %1103 = vmatpush1.msra.mxu0 %v1054
        %1104 = vmatprep.subr.mxu0 0.0
        %1105 = vmatpush1.msra.mxu0 0.0
        %1106 = vmatprep.subr.mxu0 0.0
        %1107 = vmatpush1.msra.mxu0 0.0
        %1108 = vmatprep.subr.mxu0 0.0
        %1109 = vmatpush1.msra.mxu0 0.0
        %1110 = vmatprep.subr.mxu0 0.0
        %1111 = vmatpush1.msra.mxu0 0.0
        %1112 = vmatprep.subr.mxu0 0.0
        %1113 = vmatpush1.msra.mxu0 0.0
        %1114 = vmatprep.subr.mxu0 0.0
        %1115 = vmatpush1.msra.mxu0 0.0
        %1116 = vmatprep.subr.mxu0 0.0
        %1117 = vmatpush1.msra.mxu0 0.0
        %1118 = vmatprep.subr.mxu0 0.0
        %1119 = vmatpush1.msra.mxu0 0.0
        %1120 = vmatprep.subr.mxu0 0.0
        %1121 = vmatpush1.msra.mxu0 0.0
        %1122 = vmatprep.subr.mxu0 0.0
        %1123 = vmatpush1.msra.mxu0 0.0
        %1124 = vmatprep.subr.mxu0 0.0
        %1125 = vmatpush1.msra.mxu0 0.0
        %1126 = vmatprep.subr.mxu0 0.0
        %1127 = vmatpush1.msra.mxu0 0.0
        %1128 = vmatprep.subr.mxu0 0.0
        %1129 = vmatpush1.msra.mxu0 0.0
        %1130 = vmatprep.subr.mxu0 0.0
        %1131 = vmatpush1.msra.mxu0 0.0
        %1132 = vmatprep.subr.mxu0 0.0
        %1133 = vmatpush1.msra.mxu0 0.0
        %1134 = vmatprep.subr.mxu0 0.0
        %1135 = vmatpush1.msra.mxu0 0.0
        %1136 = vmatprep.mubr.f32.mxu0 0.0
        %1137 = vmatmul.mubr.f32.gmra.mrb[0].mxu0 %v1036
        %v1138 = vpop.f32.mrb[0].mxu0
        %v1139 = vadd.f32 0.0, %v1138
        %v1140 = vpop.f32.mrb[0].mxu0
        %1141 = vdwg.mxu0
        %1142 = vmatprep.subr.mxu0 0.0
        %1143 = vmatpush1.msra.mxu0 %v1055
        %1144 = vmatprep.subr.mxu0 0.0
        %1145 = vmatpush1.msra.mxu0 %v1056
        %1146 = vmatprep.subr.mxu0 0.0
        %1147 = vmatpush1.msra.mxu0 %v1057
        %1148 = vmatprep.subr.mxu0 0.0
        %1149 = vmatpush1.msra.mxu0 %v1058
        %1150 = vmatprep.subr.mxu0 0.0
        %1151 = vmatpush1.msra.mxu0 %v1059
        %1152 = vmatprep.subr.mxu0 0.0
        %1153 = vmatpush1.msra.mxu0 %v1060
        %1154 = vmatprep.subr.mxu0 0.0
        %1155 = vmatpush1.msra.mxu0 %v1061
        %1156 = vmatprep.subr.mxu0 0.0
        %1157 = vmatpush1.msra.mxu0 %v1062
        %1158 = vmatprep.subr.mxu0 0.0
        %1159 = vmatpush1.msra.mxu0 %v1063
        %1160 = vmatprep.subr.mxu0 0.0
        %1161 = vmatpush1.msra.mxu0 %v1064
        %1162 = vmatprep.subr.mxu0 0.0
        %1163 = vmatpush1.msra.mxu0 %v1065
        %1164 = vmatprep.subr.mxu0 0.0
        %1165 = vmatpush1.msra.mxu0 %v1066
        %1166 = vmatprep.subr.mxu0 0.0
        %1167 = vmatpush1.msra.mxu0 %v1067
        %1168 = vmatprep.subr.mxu0 0.0
        %1169 = vmatpush1.msra.mxu0 %v1068
        %1170 = vmatprep.subr.mxu0 0.0
        %1171 = vmatpush1.msra.mxu0 %v1069
        %1172 = vmatprep.subr.mxu0 0.0
        %1173 = vmatpush1.msra.mxu0 %v1070
        %1174 = vmatprep.subr.mxu0 0.0
        %1175 = vmatpush1.msra.mxu0 0.0
        %1176 = vmatprep.subr.mxu0 0.0
        %1177 = vmatpush1.msra.mxu0 0.0
        %1178 = vmatprep.subr.mxu0 0.0
        %1179 = vmatpush1.msra.mxu0 0.0
        %1180 = vmatprep.subr.mxu0 0.0
        %1181 = vmatpush1.msra.mxu0 0.0
        %1182 = vmatprep.subr.mxu0 0.0
        %1183 = vmatpush1.msra.mxu0 0.0
        %1184 = vmatprep.subr.mxu0 0.0
        %1185 = vmatpush1.msra.mxu0 0.0
        %1186 = vmatprep.subr.mxu0 0.0
        %1187 = vmatpush1.msra.mxu0 0.0
        %1188 = vmatprep.subr.mxu0 0.0
        %1189 = vmatpush1.msra.mxu0 0.0
        %1190 = vmatprep.subr.mxu0 0.0
        %1191 = vmatpush1.msra.mxu0 0.0
        %1192 = vmatprep.subr.mxu0 0.0
        %1193 = vmatpush1.msra.mxu0 0.0
        %1194 = vmatprep.subr.mxu0 0.0
        %1195 = vmatpush1.msra.mxu0 0.0
        %1196 = vmatprep.subr.mxu0 0.0
        %1197 = vmatpush1.msra.mxu0 0.0
        %1198 = vmatprep.subr.mxu0 0.0
        %1199 = vmatpush1.msra.mxu0 0.0
        %1200 = vmatprep.subr.mxu0 0.0
        %1201 = vmatpush1.msra.mxu0 0.0
        %1202 = vmatprep.subr.mxu0 0.0
        %1203 = vmatpush1.msra.mxu0 0.0
        %1204 = vmatprep.subr.mxu0 0.0
        %1205 = vmatpush1.msra.mxu0 0.0
        %1206 = vmatprep.mubr.f32.mxu0 0.0
        %1207 = vmatmul.mubr.f32.gmra.mrb[0].mxu0 %v1036
        %v1208 = vpop.f32.mrb[0].mxu0
        %v1209 = vadd.f32 0.0, %v1208
        %v1210 = vpop.f32.mrb[0].mxu0
        %1211 = vdwg.mxu0
        %vm1212 = vcmask 64512
        %v1214 = vsel %vm1212, %v1038, 0
        %1216 = vmatprep.subr.mxu0 0.0
        %1217 = vmatpush1.msra.mxu0 %v1209
        %1218 = vmatprep.subr.mxu0 0.0
        %1219 = vmatpush1.msra.mxu0 0.0
        %1220 = vmatprep.subr.mxu0 0.0
        %1221 = vmatpush1.msra.mxu0 0.0
        %1222 = vmatprep.subr.mxu0 0.0
        %1223 = vmatpush1.msra.mxu0 0.0
        %1224 = vmatprep.subr.mxu0 0.0
        %1225 = vmatpush1.msra.mxu0 0.0
        %1226 = vmatprep.subr.mxu0 0.0
        %1227 = vmatpush1.msra.mxu0 0.0
        %1228 = vmatprep.subr.mxu0 0.0
        %1229 = vmatpush1.msra.mxu0 0.0
        %1230 = vmatprep.subr.mxu0 0.0
        %1231 = vmatpush1.msra.mxu0 0.0
        %1232 = vmatprep.subr.mxu0 0.0
        %1233 = vmatpush1.msra.mxu0 0.0
        %1234 = vmatprep.subr.mxu0 0.0
        %1235 = vmatpush1.msra.mxu0 0.0
        %1236 = vmatprep.subr.mxu0 0.0
        %1237 = vmatpush1.msra.mxu0 0.0
        %1238 = vmatprep.subr.mxu0 0.0
        %1239 = vmatpush1.msra.mxu0 0.0
        %1240 = vmatprep.subr.mxu0 0.0
        %1241 = vmatpush1.msra.mxu0 0.0
        %1242 = vmatprep.subr.mxu0 0.0
        %1243 = vmatpush1.msra.mxu0 0.0
        %1244 = vmatprep.subr.mxu0 0.0
        %1245 = vmatpush1.msra.mxu0 0.0
        %1246 = vmatprep.subr.mxu0 0.0
        %1247 = vmatpush1.msra.mxu0 0.0
        %1248 = vmatprep.subr.mxu0 0.0
        %1249 = vmatpush1.msra.mxu0 0.0
        %1250 = vmatprep.subr.mxu0 0.0
        %1251 = vmatpush1.msra.mxu0 0.0
        %1252 = vmatprep.subr.mxu0 0.0
        %1253 = vmatpush1.msra.mxu0 0.0
        %1254 = vmatprep.subr.mxu0 0.0
        %1255 = vmatpush1.msra.mxu0 0.0
        %1256 = vmatprep.subr.mxu0 0.0
        %1257 = vmatpush1.msra.mxu0 0.0
        %1258 = vmatprep.subr.mxu0 0.0
        %1259 = vmatpush1.msra.mxu0 0.0
        %1260 = vmatprep.subr.mxu0 0.0
        %1261 = vmatpush1.msra.mxu0 0.0
        %1262 = vmatprep.subr.mxu0 0.0
        %1263 = vmatpush1.msra.mxu0 0.0
        %1264 = vmatprep.subr.mxu0 0.0
        %1265 = vmatpush1.msra.mxu0 0.0
        %1266 = vmatprep.subr.mxu0 0.0
        %1267 = vmatpush1.msra.mxu0 0.0
        %1268 = vmatprep.subr.mxu0 0.0
        %1269 = vmatpush1.msra.mxu0 0.0
        %1270 = vmatprep.subr.mxu0 0.0
        %1271 = vmatpush1.msra.mxu0 0.0
        %1272 = vmatprep.subr.mxu0 0.0
        %1273 = vmatpush1.msra.mxu0 0.0
        %1274 = vmatprep.subr.mxu0 0.0
        %1275 = vmatpush1.msra.mxu0 0.0
        %1276 = vmatprep.subr.mxu0 0.0
        %1277 = vmatpush1.msra.mxu0 0.0
        %1278 = vmatprep.subr.mxu0 0.0
        %1279 = vmatpush1.msra.mxu0 0.0
        %1280 = vmatprep.mubr.f32.mxu0 0.0
        %1281 = vmatmul.mubr.f32.gmra.mrb[0].mxu0 %v1214
        %v1282 = vpop.f32.mrb[0].mxu0
        %v1283 = vadd.f32 0.0, %v1282
        %v1284 = vpop.f32.mrb[0].mxu0
        %1285 = vdwg.mxu0
        %v1287 = vsel %vm1212, %v1037, 0
        %1289 = vmatprep.subr.mxu0 0.0
        %1290 = vmatpush1.msra.mxu0 %v1139
        %1291 = vmatprep.subr.mxu0 0.0
        %1292 = vmatpush1.msra.mxu0 0.0
        %1293 = vmatprep.subr.mxu0 0.0
        %1294 = vmatpush1.msra.mxu0 0.0
        %1295 = vmatprep.subr.mxu0 0.0
        %1296 = vmatpush1.msra.mxu0 0.0
        %1297 = vmatprep.subr.mxu0 0.0
        %1298 = vmatpush1.msra.mxu0 0.0
        %1299 = vmatprep.subr.mxu0 0.0
        %1300 = vmatpush1.msra.mxu0 0.0
        %1301 = vmatprep.subr.mxu0 0.0
        %1302 = vmatpush1.msra.mxu0 0.0
        %1303 = vmatprep.subr.mxu0 0.0
        %1304 = vmatpush1.msra.mxu0 0.0
        %1305 = vmatprep.subr.mxu0 0.0
        %1306 = vmatpush1.msra.mxu0 0.0
        %1307 = vmatprep.subr.mxu0 0.0
        %1308 = vmatpush1.msra.mxu0 0.0
        %1309 = vmatprep.subr.mxu0 0.0
        %1310 = vmatpush1.msra.mxu0 0.0
        %1311 = vmatprep.subr.mxu0 0.0
        %1312 = vmatpush1.msra.mxu0 0.0
        %1313 = vmatprep.subr.mxu0 0.0
        %1314 = vmatpush1.msra.mxu0 0.0
        %1315 = vmatprep.subr.mxu0 0.0
        %1316 = vmatpush1.msra.mxu0 0.0
        %1317 = vmatprep.subr.mxu0 0.0
        %1318 = vmatpush1.msra.mxu0 0.0
        %1319 = vmatprep.subr.mxu0 0.0
        %1320 = vmatpush1.msra.mxu0 0.0
        %1321 = vmatprep.subr.mxu0 0.0
        %1322 = vmatpush1.msra.mxu0 0.0
        %1323 = vmatprep.subr.mxu0 0.0
        %1324 = vmatpush1.msra.mxu0 0.0
        %1325 = vmatprep.subr.mxu0 0.0
        %1326 = vmatpush1.msra.mxu0 0.0
        %1327 = vmatprep.subr.mxu0 0.0
        %1328 = vmatpush1.msra.mxu0 0.0
        %1329 = vmatprep.subr.mxu0 0.0
        %1330 = vmatpush1.msra.mxu0 0.0
        %1331 = vmatprep.subr.mxu0 0.0
        %1332 = vmatpush1.msra.mxu0 0.0
        %1333 = vmatprep.subr.mxu0 0.0
        %1334 = vmatpush1.msra.mxu0 0.0
        %1335 = vmatprep.subr.mxu0 0.0
        %1336 = vmatpush1.msra.mxu0 0.0
        %1337 = vmatprep.subr.mxu0 0.0
        %1338 = vmatpush1.msra.mxu0 0.0
        %1339 = vmatprep.subr.mxu0 0.0
        %1340 = vmatpush1.msra.mxu0 0.0
        %1341 = vmatprep.subr.mxu0 0.0
        %1342 = vmatpush1.msra.mxu0 0.0
        %1343 = vmatprep.subr.mxu0 0.0
        %1344 = vmatpush1.msra.mxu0 0.0
        %1345 = vmatprep.subr.mxu0 0.0
        %1346 = vmatpush1.msra.mxu0 0.0
        %1347 = vmatprep.subr.mxu0 0.0
        %1348 = vmatpush1.msra.mxu0 0.0
        %1349 = vmatprep.subr.mxu0 0.0
        %1350 = vmatpush1.msra.mxu0 0.0
        %1351 = vmatprep.subr.mxu0 0.0
        %1352 = vmatpush1.msra.mxu0 0.0
        %1353 = vmatprep.mubr.f32.mxu0 0.0
        %1354 = vmatmul.mubr.f32.gmra.mrb[0].mxu0 %v1287
        %v1355 = vpop.f32.mrb[0].mxu0
        %v1356 = vadd.f32 %v1283, %v1355
        %v1357 = vpop.f32.mrb[0].mxu0
        %1358 = vdwg.mxu0
        %v1360 = vlaneseq
        %v1361 = vshrl.u32 %v1360, 7
        %v1362 = vsub.s32 0, %v1361
        %v1363 = vrot.slane %v1071, %v1362
        %v1365 = vadd.f32 %v1356, %v1363
        %v1366 = vmax.f32 %v1365, 0.0
        %v1367 = vld [vmem:[%s13] sm:$0xff]
        %v1368 = vld [vmem:[%s14] sm:$0xff]
        %v1369 = vld [vmem:[#allocation7] sm:$0xff]
        %v1370 = vld [vmem:[#allocation7 + $0x8] sm:$0xff]
        %v1371 = vld [vmem:[#allocation7 + $0x10] sm:$0xff]
        %v1372 = vld [vmem:[#allocation7 + $0x18] sm:$0xff]
        %v1373 = vld [vmem:[#allocation7 + $0x20] sm:$0xff]
        %v1374 = vld [vmem:[#allocation7 + $0x28] sm:$0xff]
        %v1375 = vld [vmem:[#allocation7 + $0x30] sm:$0xff]
        %v1376 = vld [vmem:[#allocation7 + $0x38] sm:$0xff]
        %v1377 = vld [vmem:[#allocation7 + $0x40] sm:$0xff]
        %v1378 = vld [vmem:[#allocation7 + $0x48] sm:$0xff]
        %v1379 = vld [vmem:[#allocation7 + $0x50] sm:$0xff]
        %v1380 = vld [vmem:[#allocation7 + $0x58] sm:$0xff]
        %v1381 = vld [vmem:[#allocation7 + $0x60] sm:$0xff]
        %v1382 = vld [vmem:[#allocation7 + $0x68] sm:$0xff]
        %v1383 = vld [vmem:[#allocation7 + $0x70] sm:$0xff]
        %v1384 = vld [vmem:[#allocation7 + $0x78] sm:$0xff]
        %v1385 = vld [vmem:[#allocation9] sm:$0xff]
        %v1386 = vld [vmem:[#allocation9 + $0x8] sm:$0xff]
        %v1387 = vld [vmem:[#allocation9 + $0x10] sm:$0xff]
        %v1388 = vld [vmem:[#allocation9 + $0x18] sm:$0xff]
        %v1389 = vld [vmem:[#allocation9 + $0x20] sm:$0xff]
        %v1390 = vld [vmem:[#allocation9 + $0x28] sm:$0xff]
        %v1391 = vld [vmem:[#allocation9 + $0x30] sm:$0xff]
        %v1392 = vld [vmem:[#allocation9 + $0x38] sm:$0xff]
        %v1393 = vld [vmem:[#allocation9 + $0x40] sm:$0xff]
        %v1394 = vld [vmem:[#allocation9 + $0x48] sm:$0xff]
        %v1395 = vld [vmem:[#allocation9 + $0x50] sm:$0xff]
        %v1396 = vld [vmem:[#allocation9 + $0x58] sm:$0xff]
        %v1397 = vld [vmem:[#allocation9 + $0x60] sm:$0xff]
        %v1398 = vld [vmem:[#allocation9 + $0x68] sm:$0xff]
        %v1399 = vld [vmem:[#allocation9 + $0x70] sm:$0xff]
        %v1400 = vld [vmem:[#allocation9 + $0x78] sm:$0xff]
        %v1401 = vld [vmem:[%s17] sm:$0x1]
        %1402 = vmatprep.subr.mxu0 0.0
        %1403 = vmatpush1.msra.mxu0 %v1369
        %1404 = vmatprep.subr.mxu0 0.0
        %1405 = vmatpush1.msra.mxu0 %v1370
        %1406 = vmatprep.subr.mxu0 0.0
        %1407 = vmatpush1.msra.mxu0 %v1371
        %1408 = vmatprep.subr.mxu0 0.0
        %1409 = vmatpush1.msra.mxu0 %v1372
        %1410 = vmatprep.subr.mxu0 0.0
        %1411 = vmatpush1.msra.mxu0 %v1373
        %1412 = vmatprep.subr.mxu0 0.0
        %1413 = vmatpush1.msra.mxu0 %v1374
        %1414 = vmatprep.subr.mxu0 0.0
        %1415 = vmatpush1.msra.mxu0 %v1375
        %1416 = vmatprep.subr.mxu0 0.0
        %1417 = vmatpush1.msra.mxu0 %v1376
        %1418 = vmatprep.subr.mxu0 0.0
        %1419 = vmatpush1.msra.mxu0 %v1377
        %1420 = vmatprep.subr.mxu0 0.0
        %1421 = vmatpush1.msra.mxu0 %v1378
        %1422 = vmatprep.subr.mxu0 0.0
        %1423 = vmatpush1.msra.mxu0 %v1379
        %1424 = vmatprep.subr.mxu0 0.0
        %1425 = vmatpush1.msra.mxu0 %v1380
        %1426 = vmatprep.subr.mxu0 0.0
        %1427 = vmatpush1.msra.mxu0 %v1381
        %1428 = vmatprep.subr.mxu0 0.0
        %1429 = vmatpush1.msra.mxu0 %v1382
        %1430 = vmatprep.subr.mxu0 0.0
        %1431 = vmatpush1.msra.mxu0 %v1383
        %1432 = vmatprep.subr.mxu0 0.0
        %1433 = vmatpush1.msra.mxu0 %v1384
        %1434 = vmatprep.subr.mxu0 0.0
        %1435 = vmatpush1.msra.mxu0 0.0
        %1436 = vmatprep.subr.mxu0 0.0
        %1437 = vmatpush1.msra.mxu0 0.0
        %1438 = vmatprep.subr.mxu0 0.0
        %1439 = vmatpush1.msra.mxu0 0.0
        %1440 = vmatprep.subr.mxu0 0.0
        %1441 = vmatpush1.msra.mxu0 0.0
        %1442 = vmatprep.subr.mxu0 0.0
        %1443 = vmatpush1.msra.mxu0 0.0
        %1444 = vmatprep.subr.mxu0 0.0
        %1445 = vmatpush1.msra.mxu0 0.0
        %1446 = vmatprep.subr.mxu0 0.0
        %1447 = vmatpush1.msra.mxu0 0.0
        %1448 = vmatprep.subr.mxu0 0.0
        %1449 = vmatpush1.msra.mxu0 0.0
        %1450 = vmatprep.subr.mxu0 0.0
        %1451 = vmatpush1.msra.mxu0 0.0
        %1452 = vmatprep.subr.mxu0 0.0
        %1453 = vmatpush1.msra.mxu0 0.0
        %1454 = vmatprep.subr.mxu0 0.0
        %1455 = vmatpush1.msra.mxu0 0.0
        %1456 = vmatprep.subr.mxu0 0.0
        %1457 = vmatpush1.msra.mxu0 0.0
        %1458 = vmatprep.subr.mxu0 0.0
        %1459 = vmatpush1.msra.mxu0 0.0
        %1460 = vmatprep.subr.mxu0 0.0
        %1461 = vmatpush1.msra.mxu0 0.0
        %1462 = vmatprep.subr.mxu0 0.0
        %1463 = vmatpush1.msra.mxu0 0.0
        %1464 = vmatprep.subr.mxu0 0.0
        %1465 = vmatpush1.msra.mxu0 0.0
        %1466 = vmatprep.mubr.f32.mxu0 0.0
        %1467 = vmatmul.mubr.f32.gmra.mrb[0].mxu0 %v1366
        %v1468 = vpop.f32.mrb[0].mxu0
        %v1469 = vadd.f32 0.0, %v1468
        %v1470 = vpop.f32.mrb[0].mxu0
        %1471 = vdwg.mxu0
        %1472 = vmatprep.subr.mxu0 0.0
        %1473 = vmatpush1.msra.mxu0 %v1385
        %1474 = vmatprep.subr.mxu0 0.0
        %1475 = vmatpush1.msra.mxu0 %v1386
        %1476 = vmatprep.subr.mxu0 0.0
        %1477 = vmatpush1.msra.mxu0 %v1387
        %1478 = vmatprep.subr.mxu0 0.0
        %1479 = vmatpush1.msra.mxu0 %v1388
        %1480 = vmatprep.subr.mxu0 0.0
        %1481 = vmatpush1.msra.mxu0 %v1389
        %1482 = vmatprep.subr.mxu0 0.0
        %1483 = vmatpush1.msra.mxu0 %v1390
        %1484 = vmatprep.subr.mxu0 0.0
        %1485 = vmatpush1.msra.mxu0 %v1391
        %1486 = vmatprep.subr.mxu0 0.0
        %1487 = vmatpush1.msra.mxu0 %v1392
        %1488 = vmatprep.subr.mxu0 0.0
        %1489 = vmatpush1.msra.mxu0 %v1393
        %1490 = vmatprep.subr.mxu0 0.0
        %1491 = vmatpush1.msra.mxu0 %v1394
        %1492 = vmatprep.subr.mxu0 0.0
        %1493 = vmatpush1.msra.mxu0 %v1395
        %1494 = vmatprep.subr.mxu0 0.0
        %1495 = vmatpush1.msra.mxu0 %v1396
        %1496 = vmatprep.subr.mxu0 0.0
        %1497 = vmatpush1.msra.mxu0 %v1397
        %1498 = vmatprep.subr.mxu0 0.0
        %1499 = vmatpush1.msra.mxu0 %v1398
        %1500 = vmatprep.subr.mxu0 0.0
        %1501 = vmatpush1.msra.mxu0 %v1399
        %1502 = vmatprep.subr.mxu0 0.0
        %1503 = vmatpush1.msra.mxu0 %v1400
        %1504 = vmatprep.subr.mxu0 0.0
        %1505 = vmatpush1.msra.mxu0 0.0
        %1506 = vmatprep.subr.mxu0 0.0
        %1507 = vmatpush1.msra.mxu0 0.0
        %1508 = vmatprep.subr.mxu0 0.0
        %1509 = vmatpush1.msra.mxu0 0.0
        %1510 = vmatprep.subr.mxu0 0.0
        %1511 = vmatpush1.msra.mxu0 0.0
        %1512 = vmatprep.subr.mxu0 0.0
        %1513 = vmatpush1.msra.mxu0 0.0
        %1514 = vmatprep.subr.mxu0 0.0
        %1515 = vmatpush1.msra.mxu0 0.0
        %1516 = vmatprep.subr.mxu0 0.0
        %1517 = vmatpush1.msra.mxu0 0.0
        %1518 = vmatprep.subr.mxu0 0.0
        %1519 = vmatpush1.msra.mxu0 0.0
        %1520 = vmatprep.subr.mxu0 0.0
        %1521 = vmatpush1.msra.mxu0 0.0
        %1522 = vmatprep.subr.mxu0 0.0
        %1523 = vmatpush1.msra.mxu0 0.0
        %1524 = vmatprep.subr.mxu0 0.0
        %1525 = vmatpush1.msra.mxu0 0.0
        %1526 = vmatprep.subr.mxu0 0.0
        %1527 = vmatpush1.msra.mxu0 0.0
        %1528 = vmatprep.subr.mxu0 0.0
        %1529 = vmatpush1.msra.mxu0 0.0
        %1530 = vmatprep.subr.mxu0 0.0
        %1531 = vmatpush1.msra.mxu0 0.0
        %1532 = vmatprep.subr.mxu0 0.0
        %1533 = vmatpush1.msra.mxu0 0.0
        %1534 = vmatprep.subr.mxu0 0.0
        %1535 = vmatpush1.msra.mxu0 0.0
        %1536 = vmatprep.mubr.f32.mxu0 0.0
        %1537 = vmatmul.mubr.f32.gmra.mrb[0].mxu0 %v1366
        %v1538 = vpop.f32.mrb[0].mxu0
        %v1539 = vadd.f32 0.0, %v1538
        %v1540 = vpop.f32.mrb[0].mxu0
        %1541 = vdwg.mxu0
        %v1543 = vsel %vm1212, %v1368, 0
        %1545 = vmatprep.subr.mxu0 0.0
        %1546 = vmatpush1.msra.mxu0 %v1539
        %1547 = vmatprep.subr.mxu0 0.0
        %1548 = vmatpush1.msra.mxu0 0.0
        %1549 = vmatprep.subr.mxu0 0.0
        %1550 = vmatpush1.msra.mxu0 0.0
        %1551 = vmatprep.subr.mxu0 0.0
        %1552 = vmatpush1.msra.mxu0 0.0
        %1553 = vmatprep.subr.mxu0 0.0
        %1554 = vmatpush1.msra.mxu0 0.0
        %1555 = vmatprep.subr.mxu0 0.0
        %1556 = vmatpush1.msra.mxu0 0.0
        %1557 = vmatprep.subr.mxu0 0.0
        %1558 = vmatpush1.msra.mxu0 0.0
        %1559 = vmatprep.subr.mxu0 0.0
        %1560 = vmatpush1.msra.mxu0 0.0
        %1561 = vmatprep.subr.mxu0 0.0
        %1562 = vmatpush1.msra.mxu0 0.0
        %1563 = vmatprep.subr.mxu0 0.0
        %1564 = vmatpush1.msra.mxu0 0.0
        %1565 = vmatprep.subr.mxu0 0.0
        %1566 = vmatpush1.msra.mxu0 0.0
        %1567 = vmatprep.subr.mxu0 0.0
        %1568 = vmatpush1.msra.mxu0 0.0
        %1569 = vmatprep.subr.mxu0 0.0
        %1570 = vmatpush1.msra.mxu0 0.0
        %1571 = vmatprep.subr.mxu0 0.0
        %1572 = vmatpush1.msra.mxu0 0.0
        %1573 = vmatprep.subr.mxu0 0.0
        %1574 = vmatpush1.msra.mxu0 0.0
        %1575 = vmatprep.subr.mxu0 0.0
        %1576 = vmatpush1.msra.mxu0 0.0
        %1577 = vmatprep.subr.mxu0 0.0
        %1578 = vmatpush1.msra.mxu0 0.0
        %1579 = vmatprep.subr.mxu0 0.0
        %1580 = vmatpush1.msra.mxu0 0.0
        %1581 = vmatprep.subr.mxu0 0.0
        %1582 = vmatpush1.msra.mxu0 0.0
        %1583 = vmatprep.subr.mxu0 0.0
        %1584 = vmatpush1.msra.mxu0 0.0
        %1585 = vmatprep.subr.mxu0 0.0
        %1586 = vmatpush1.msra.mxu0 0.0
        %1587 = vmatprep.subr.mxu0 0.0
        %1588 = vmatpush1.msra.mxu0 0.0
        %1589 = vmatprep.subr.mxu0 0.0
        %1590 = vmatpush1.msra.mxu0 0.0
        %1591 = vmatprep.subr.mxu0 0.0
        %1592 = vmatpush1.msra.mxu0 0.0
        %1593 = vmatprep.subr.mxu0 0.0
        %1594 = vmatpush1.msra.mxu0 0.0
        %1595 = vmatprep.subr.mxu0 0.0
        %1596 = vmatpush1.msra.mxu0 0.0
        %1597 = vmatprep.subr.mxu0 0.0
        %1598 = vmatpush1.msra.mxu0 0.0
        %1599 = vmatprep.subr.mxu0 0.0
        %1600 = vmatpush1.msra.mxu0 0.0
        %1601 = vmatprep.subr.mxu0 0.0
        %1602 = vmatpush1.msra.mxu0 0.0
        %1603 = vmatprep.subr.mxu0 0.0
        %1604 = vmatpush1.msra.mxu0 0.0
        %1605 = vmatprep.subr.mxu0 0.0
        %1606 = vmatpush1.msra.mxu0 0.0
        %1607 = vmatprep.subr.mxu0 0.0
        %1608 = vmatpush1.msra.mxu0 0.0
        %1609 = vmatprep.mubr.f32.mxu0 0.0
        %1610 = vmatmul.mubr.f32.gmra.mrb[0].mxu0 %v1543
        %v1611 = vpop.f32.mrb[0].mxu0
        %v1612 = vadd.f32 0.0, %v1611
        %v1613 = vpop.f32.mrb[0].mxu0
        %1614 = vdwg.mxu0
        %v1616 = vsel %vm1212, %v1367, 0
        %1618 = vmatprep.subr.mxu0 0.0
        %1619 = vmatpush1.msra.mxu0 %v1469
        %1620 = vmatprep.subr.mxu0 0.0
        %1621 = vmatpush1.msra.mxu0 0.0
        %1622 = vmatprep.subr.mxu0 0.0
        %1623 = vmatpush1.msra.mxu0 0.0
        %1624 = vmatprep.subr.mxu0 0.0
        %1625 = vmatpush1.msra.mxu0 0.0
        %1626 = vmatprep.subr.mxu0 0.0
        %1627 = vmatpush1.msra.mxu0 0.0
        %1628 = vmatprep.subr.mxu0 0.0
        %1629 = vmatpush1.msra.mxu0 0.0
        %1630 = vmatprep.subr.mxu0 0.0
        %1631 = vmatpush1.msra.mxu0 0.0
        %1632 = vmatprep.subr.mxu0 0.0
        %1633 = vmatpush1.msra.mxu0 0.0
        %1634 = vmatprep.subr.mxu0 0.0
        %1635 = vmatpush1.msra.mxu0 0.0
        %1636 = vmatprep.subr.mxu0 0.0
        %1637 = vmatpush1.msra.mxu0 0.0
        %1638 = vmatprep.subr.mxu0 0.0
        %1639 = vmatpush1.msra.mxu0 0.0
        %1640 = vmatprep.subr.mxu0 0.0
        %1641 = vmatpush1.msra.mxu0 0.0
        %1642 = vmatprep.subr.mxu0 0.0
        %1643 = vmatpush1.msra.mxu0 0.0
        %1644 = vmatprep.subr.mxu0 0.0
        %1645 = vmatpush1.msra.mxu0 0.0
        %1646 = vmatprep.subr.mxu0 0.0
        %1647 = vmatpush1.msra.mxu0 0.0
        %1648 = vmatprep.subr.mxu0 0.0
        %1649 = vmatpush1.msra.mxu0 0.0
        %1650 = vmatprep.subr.mxu0 0.0
        %1651 = vmatpush1.msra.mxu0 0.0
        %1652 = vmatprep.subr.mxu0 0.0
        %1653 = vmatpush1.msra.mxu0 0.0
        %1654 = vmatprep.subr.mxu0 0.0
        %1655 = vmatpush1.msra.mxu0 0.0
        %1656 = vmatprep.subr.mxu0 0.0
        %1657 = vmatpush1.msra.mxu0 0.0
        %1658 = vmatprep.subr.mxu0 0.0
        %1659 = vmatpush1.msra.mxu0 0.0
        %1660 = vmatprep.subr.mxu0 0.0
        %1661 = vmatpush1.msra.mxu0 0.0
        %1662 = vmatprep.subr.mxu0 0.0
        %1663 = vmatpush1.msra.mxu0 0.0
        %1664 = vmatprep.subr.mxu0 0.0
        %1665 = vmatpush1.msra.mxu0 0.0
        %1666 = vmatprep.subr.mxu0 0.0
        %1667 = vmatpush1.msra.mxu0 0.0
        %1668 = vmatprep.subr.mxu0 0.0
        %1669 = vmatpush1.msra.mxu0 0.0
        %1670 = vmatprep.subr.mxu0 0.0
        %1671 = vmatpush1.msra.mxu0 0.0
        %1672 = vmatprep.subr.mxu0 0.0
        %1673 = vmatpush1.msra.mxu0 0.0
        %1674 = vmatprep.subr.mxu0 0.0
        %1675 = vmatpush1.msra.mxu0 0.0
        %1676 = vmatprep.subr.mxu0 0.0
        %1677 = vmatpush1.msra.mxu0 0.0
        %1678 = vmatprep.subr.mxu0 0.0
        %1679 = vmatpush1.msra.mxu0 0.0
        %1680 = vmatprep.subr.mxu0 0.0
        %1681 = vmatpush1.msra.mxu0 0.0
        %1682 = vmatprep.mubr.f32.mxu0 0.0
        %1683 = vmatmul.mubr.f32.gmra.mrb[0].mxu0 %v1616
        %v1684 = vpop.f32.mrb[0].mxu0
        %v1685 = vadd.f32 %v1612, %v1684
        %v1686 = vpop.f32.mrb[0].mxu0
        %1687 = vdwg.mxu0
        %v1689 = vlaneseq
        %v1690 = vshrl.u32 %v1689, 7
        %v1691 = vsub.s32 0, %v1690
        %v1692 = vrot.slane %v1401, %v1691
        %v1694 = vadd.f32 %v1685, %v1692
        %v1695 = vmax.f32 %v1694, 0.0
        %v1696 = vld [vmem:[%s820] sm:$0xff]
        %v1697 = vld [vmem:[#allocation10] sm:$0xff]
        %v1698 = vld [vmem:[#allocation10 + $0x8] sm:$0xff]
        %v1699 = vld [vmem:[#allocation10 + $0x10] sm:$0xff]
        %v1700 = vld [vmem:[#allocation10 + $0x18] sm:$0xff]
        %v1701 = vld [vmem:[#allocation10 + $0x20] sm:$0xff]
        %v1702 = vld [vmem:[#allocation10 + $0x28] sm:$0xff]
        %v1703 = vld [vmem:[#allocation10 + $0x30] sm:$0xff]
        %v1704 = vld [vmem:[#allocation10 + $0x38] sm:$0xff]
        %v1705 = vld [vmem:[%s19] sm:$0x1]
        %v1707 = vlaneseq
        %v1708 = vshrl.u32 %v1707, 7
        %v1709 = vsub.s32 0, %v1708
        %v1710 = vrot.slane %v1705, %v1709
        %v1713 = vsel %vm826, %v1696, 0
        %1715 = vmatprep.subr.mxu0 0.0
        %1716 = vmatpush1.msra.mxu0 %v1697
        %1717 = vmatprep.subr.mxu0 0.0
        %1718 = vmatpush1.msra.mxu0 %v1698
        %1719 = vmatprep.subr.mxu0 0.0
        %1720 = vmatpush1.msra.mxu0 %v1699
        %1721 = vmatprep.subr.mxu0 0.0
        %1722 = vmatpush1.msra.mxu0 %v1700
        %1723 = vmatprep.subr.mxu0 0.0
        %1724 = vmatpush1.msra.mxu0 %v1701
        %1725 = vmatprep.subr.mxu0 0.0
        %1726 = vmatpush1.msra.mxu0 %v1702
        %1727 = vmatprep.subr.mxu0 0.0
        %1728 = vmatpush1.msra.mxu0 %v1703
        %1729 = vmatprep.subr.mxu0 0.0
        %1730 = vmatpush1.msra.mxu0 %v1704
        %1731 = vmatprep.subr.mxu0 0.0
        %1732 = vmatpush1.msra.mxu0 0.0
        %1733 = vmatprep.subr.mxu0 0.0
        %1734 = vmatpush1.msra.mxu0 0.0
        %1735 = vmatprep.subr.mxu0 0.0
        %1736 = vmatpush1.msra.mxu0 0.0
        %1737 = vmatprep.subr.mxu0 0.0
        %1738 = vmatpush1.msra.mxu0 0.0
        %1739 = vmatprep.subr.mxu0 0.0
        %1740 = vmatpush1.msra.mxu0 0.0
        %1741 = vmatprep.subr.mxu0 0.0
        %1742 = vmatpush1.msra.mxu0 0.0
        %1743 = vmatprep.subr.mxu0 0.0
        %1744 = vmatpush1.msra.mxu0 0.0
        %1745 = vmatprep.subr.mxu0 0.0
        %1746 = vmatpush1.msra.mxu0 0.0
        %1747 = vmatprep.subr.mxu0 0.0
        %1748 = vmatpush1.msra.mxu0 0.0
        %1749 = vmatprep.subr.mxu0 0.0
        %1750 = vmatpush1.msra.mxu0 0.0
        %1751 = vmatprep.subr.mxu0 0.0
        %1752 = vmatpush1.msra.mxu0 0.0
        %1753 = vmatprep.subr.mxu0 0.0
        %1754 = vmatpush1.msra.mxu0 0.0
        %1755 = vmatprep.subr.mxu0 0.0
        %1756 = vmatpush1.msra.mxu0 0.0
        %1757 = vmatprep.subr.mxu0 0.0
        %1758 = vmatpush1.msra.mxu0 0.0
        %1759 = vmatprep.subr.mxu0 0.0
        %1760 = vmatpush1.msra.mxu0 0.0
        %1761 = vmatprep.subr.mxu0 0.0
        %1762 = vmatpush1.msra.mxu0 0.0
        %1763 = vmatprep.subr.mxu0 0.0
        %1764 = vmatpush1.msra.mxu0 0.0
        %1765 = vmatprep.subr.mxu0 0.0
        %1766 = vmatpush1.msra.mxu0 0.0
        %1767 = vmatprep.subr.mxu0 0.0
        %1768 = vmatpush1.msra.mxu0 0.0
        %1769 = vmatprep.subr.mxu0 0.0
        %1770 = vmatpush1.msra.mxu0 0.0
        %1771 = vmatprep.subr.mxu0 0.0
        %1772 = vmatpush1.msra.mxu0 0.0
        %1773 = vmatprep.subr.mxu0 0.0
        %1774 = vmatpush1.msra.mxu0 0.0
        %1775 = vmatprep.subr.mxu0 0.0
        %1776 = vmatpush1.msra.mxu0 0.0
        %1777 = vmatprep.subr.mxu0 0.0
        %1778 = vmatpush1.msra.mxu0 0.0
        %1779 = vmatprep.mubr.f32.mxu0 0.0
        %1780 = vmatmul.mubr.f32.gmra.mrb[0].mxu0 %v1713
        %v1781 = vpop.f32.mrb[0].mxu0
        %v1782 = vadd.f32 %v1710, %v1781
        %v1783 = vpop.f32.mrb[0].mxu0
        %1784 = vdwg.mxu0
        %v1785 = vadd.f32 %v1695, %v1782
        %v1786 = vld [vmem:[#allocation12] sm:$0xff]
        %v1787 = vld [vmem:[#allocation12 + $0x8] sm:$0xff]
        %v1788 = vld [vmem:[#allocation12 + $0x10] sm:$0xff]
        %v1789 = vld [vmem:[#allocation12 + $0x18] sm:$0xff]
        %v1790 = vld [vmem:[#allocation12 + $0x20] sm:$0xff]
        %v1791 = vld [vmem:[#allocation12 + $0x28] sm:$0xff]
        %v1792 = vld [vmem:[#allocation12 + $0x30] sm:$0xff]
        %v1793 = vld [vmem:[#allocation12 + $0x38] sm:$0xff]
        %v1794 = vld [vmem:[#allocation12 + $0x40] sm:$0xff]
        %v1795 = vld [vmem:[#allocation12 + $0x48] sm:$0xff]
        %v1796 = vld [vmem:[#allocation12 + $0x50] sm:$0xff]
        %v1797 = vld [vmem:[#allocation12 + $0x58] sm:$0xff]
        %v1798 = vld [vmem:[#allocation12 + $0x60] sm:$0xff]
        %v1799 = vld [vmem:[#allocation12 + $0x68] sm:$0xff]
        %v1800 = vld [vmem:[#allocation12 + $0x70] sm:$0xff]
        %v1801 = vld [vmem:[#allocation12 + $0x78] sm:$0xff]
        %1802 = vmatprep.subr.mxu0 0.0
        %1803 = vmatpush1.msra.mxu0 %v1786
        %1804 = vmatprep.subr.mxu0 0.0
        %1805 = vmatpush1.msra.mxu0 %v1787
        %1806 = vmatprep.subr.mxu0 0.0
        %1807 = vmatpush1.msra.mxu0 %v1788
        %1808 = vmatprep.subr.mxu0 0.0
        %1809 = vmatpush1.msra.mxu0 %v1789
        %1810 = vmatprep.subr.mxu0 0.0
        %1811 = vmatpush1.msra.mxu0 %v1790
        %1812 = vmatprep.subr.mxu0 0.0
        %1813 = vmatpush1.msra.mxu0 %v1791
        %1814 = vmatprep.subr.mxu0 0.0
        %1815 = vmatpush1.msra.mxu0 %v1792
        %1816 = vmatprep.subr.mxu0 0.0
        %1817 = vmatpush1.msra.mxu0 %v1793
        %1818 = vmatprep.subr.mxu0 0.0
        %1819 = vmatpush1.msra.mxu0 %v1794
        %1820 = vmatprep.subr.mxu0 0.0
        %1821 = vmatpush1.msra.mxu0 %v1795
        %1822 = vmatprep.subr.mxu0 0.0
        %1823 = vmatpush1.msra.mxu0 %v1796
        %1824 = vmatprep.subr.mxu0 0.0
        %1825 = vmatpush1.msra.mxu0 %v1797
        %1826 = vmatprep.subr.mxu0 0.0
        %1827 = vmatpush1.msra.mxu0 %v1798
        %1828 = vmatprep.subr.mxu0 0.0
        %1829 = vmatpush1.msra.mxu0 %v1799
        %1830 = vmatprep.subr.mxu0 0.0
        %1831 = vmatpush1.msra.mxu0 %v1800
        %1832 = vmatprep.subr.mxu0 0.0
        %1833 = vmatpush1.msra.mxu0 %v1801
        %1834 = vmatprep.subr.mxu0 0.0
        %1835 = vmatpush1.msra.mxu0 0.0
        %1836 = vmatprep.subr.mxu0 0.0
        %1837 = vmatpush1.msra.mxu0 0.0
        %1838 = vmatprep.subr.mxu0 0.0
        %1839 = vmatpush1.msra.mxu0 0.0
        %1840 = vmatprep.subr.mxu0 0.0
        %1841 = vmatpush1.msra.mxu0 0.0
        %1842 = vmatprep.subr.mxu0 0.0
        %1843 = vmatpush1.msra.mxu0 0.0
        %1844 = vmatprep.subr.mxu0 0.0
        %1845 = vmatpush1.msra.mxu0 0.0
        %1846 = vmatprep.subr.mxu0 0.0
        %1847 = vmatpush1.msra.mxu0 0.0
        %1848 = vmatprep.subr.mxu0 0.0
        %1849 = vmatpush1.msra.mxu0 0.0
        %1850 = vmatprep.subr.mxu0 0.0
        %1851 = vmatpush1.msra.mxu0 0.0
        %1852 = vmatprep.subr.mxu0 0.0
        %1853 = vmatpush1.msra.mxu0 0.0
        %1854 = vmatprep.subr.mxu0 0.0
        %1855 = vmatpush1.msra.mxu0 0.0
        %1856 = vmatprep.subr.mxu0 0.0
        %1857 = vmatpush1.msra.mxu0 0.0
        %1858 = vmatprep.subr.mxu0 0.0
        %1859 = vmatpush1.msra.mxu0 0.0
        %1860 = vmatprep.subr.mxu0 0.0
        %1861 = vmatpush1.msra.mxu0 0.0
        %1862 = vmatprep.subr.mxu0 0.0
        %1863 = vmatpush1.msra.mxu0 0.0
        %1864 = vmatprep.subr.mxu0 0.0
        %1865 = vmatpush1.msra.mxu0 0.0
        %1866 = vmatprep.mubr.f32.mxu0 0.0
        %1867 = vmatmul.mubr.f32.gmra.mrb[0].mxu0 %v1785
        %v1868 = vpop.f32.mrb[0].mxu0
        %v1869 = vadd.f32 0.0, %v1868
        %v1870 = vpop.f32.mrb[0].mxu0
        %1871 = vdwg.mxu0
        %v1872 = vsub.f32 %v1785, %v1869
        %v1873 = vmul.f32 %v1872, %v1872
        %1874 = vmatprep.subr.mxu0 0.0
        %1875 = vmatpush1.msra.mxu0 %v1786
        %1876 = vmatprep.subr.mxu0 0.0
        %1877 = vmatpush1.msra.mxu0 %v1787
        %1878 = vmatprep.subr.mxu0 0.0
        %1879 = vmatpush1.msra.mxu0 %v1788
        %1880 = vmatprep.subr.mxu0 0.0
        %1881 = vmatpush1.msra.mxu0 %v1789
        %1882 = vmatprep.subr.mxu0 0.0
        %1883 = vmatpush1.msra.mxu0 %v1790
        %1884 = vmatprep.subr.mxu0 0.0
        %1885 = vmatpush1.msra.mxu0 %v1791
        %1886 = vmatprep.subr.mxu0 0.0
        %1887 = vmatpush1.msra.mxu0 %v1792
        %1888 = vmatprep.subr.mxu0 0.0
        %1889 = vmatpush1.msra.mxu0 %v1793
        %1890 = vmatprep.subr.mxu0 0.0
        %1891 = vmatpush1.msra.mxu0 %v1794
        %1892 = vmatprep.subr.mxu0 0.0
        %1893 = vmatpush1.msra.mxu0 %v1795
        %1894 = vmatprep.subr.mxu0 0.0
        %1895 = vmatpush1.msra.mxu0 %v1796
        %1896 = vmatprep.subr.mxu0 0.0
        %1897 = vmatpush1.msra.mxu0 %v1797
        %1898 = vmatprep.subr.mxu0 0.0
        %1899 = vmatpush1.msra.mxu0 %v1798
        %1900 = vmatprep.subr.mxu0 0.0
        %1901 = vmatpush1.msra.mxu0 %v1799
        %1902 = vmatprep.subr.mxu0 0.0
        %1903 = vmatpush1.msra.mxu0 %v1800
        %1904 = vmatprep.subr.mxu0 0.0
        %1905 = vmatpush1.msra.mxu0 %v1801
        %1906 = vmatprep.subr.mxu0 0.0
        %1907 = vmatpush1.msra.mxu0 0.0
        %1908 = vmatprep.subr.mxu0 0.0
        %1909 = vmatpush1.msra.mxu0 0.0
        %1910 = vmatprep.subr.mxu0 0.0
        %1911 = vmatpush1.msra.mxu0 0.0
        %1912 = vmatprep.subr.mxu0 0.0
        %1913 = vmatpush1.msra.mxu0 0.0
        %1914 = vmatprep.subr.mxu0 0.0
        %1915 = vmatpush1.msra.mxu0 0.0
        %1916 = vmatprep.subr.mxu0 0.0
        %1917 = vmatpush1.msra.mxu0 0.0
        %1918 = vmatprep.subr.mxu0 0.0
        %1919 = vmatpush1.msra.mxu0 0.0
        %1920 = vmatprep.subr.mxu0 0.0
        %1921 = vmatpush1.msra.mxu0 0.0
        %1922 = vmatprep.subr.mxu0 0.0
        %1923 = vmatpush1.msra.mxu0 0.0
        %1924 = vmatprep.subr.mxu0 0.0
        %1925 = vmatpush1.msra.mxu0 0.0
        %1926 = vmatprep.subr.mxu0 0.0
        %1927 = vmatpush1.msra.mxu0 0.0
        %1928 = vmatprep.subr.mxu0 0.0
        %1929 = vmatpush1.msra.mxu0 0.0
        %1930 = vmatprep.subr.mxu0 0.0
        %1931 = vmatpush1.msra.mxu0 0.0
        %1932 = vmatprep.subr.mxu0 0.0
        %1933 = vmatpush1.msra.mxu0 0.0
        %1934 = vmatprep.subr.mxu0 0.0
        %1935 = vmatpush1.msra.mxu0 0.0
        %1936 = vmatprep.subr.mxu0 0.0
        %1937 = vmatpush1.msra.mxu0 0.0
        %1938 = vmatprep.mubr.f32.mxu0 0.0
        %1939 = vmatmul.mubr.f32.gmra.mrb[0].mxu0 %v1873
        %v1940 = vpop.f32.mrb[0].mxu0
        %v1941 = vadd.f32 1e-05, %v1940
        %v1942 = vpop.f32.mrb[0].mxu0
        %1943 = vdwg.mxu0
        %v1944 = vrsqrt.pop %v1941
        %v1945 = vmul.f32 %v1872, %v1944
        %v1946 = vld [vmem:[%s21] sm:$0x1]
        %v1948 = vlaneseq
        %v1949 = vshrl.u32 %v1948, 7
        %v1950 = vsub.s32 0, %v1949
        %v1951 = vrot.slane %v1946, %v1950
        %v1953 = vmul.f32 %v1945, %v1951
        %v1954 = vld [vmem:[%s22] sm:$0x1]
        %v1956 = vlaneseq
        %v1957 = vshrl.u32 %v1956, 7
        %v1958 = vsub.s32 0, %v1957
        %v1959 = vrot.slane %v1954, %v1958
        %v1961 = vadd.f32 %v1953, %v1959
        %v1962 = vmax.f32 %v1961, 0.0
        %1963 = vst [vmem:[%s824] sm:$0xff] %v1962
        %p1964 = scmp.lt.s32.totalorder %s38, 1
        %s1965 = scalar_select %p1964, %s38, 1
        %s1966 = smul.addr %s1965, 8
        %s1967 = scalar_lea.vmem %s23, %s1966
        // Predicated region
        $region141: #{branch1_block.1} parent=111 // pred_check
          %p1968 = pneg %p549
        $region142: #{branch1_block.1} parent=111 // pred_check_branch
          %1970 = sbr.rel (%p1968) target = $region144
        $region143: #{branch1_block.1} parent=111 // pred_region
          _
        $region144: #{branch1_block.1} parent=111 // pred_fallthru
          _
      $region112: #{branch1_block.1} parent=5 // pred_fallthru
        _
      %p1971 = scmp.le.s32.totalorder 2, %s33
      // Predicated region
      $region145: #{branch1_block.1} parent=5 // pred_check
        %p1972 = pneg %p1971
      $region146: #{branch1_block.1} parent=5 // pred_check_branch
        %1974 = sbr.rel (%p1972) target = $region148
      $region147: #{branch1_block.1} parent=5 // pred_region
        %s1975 = ssub.s32 %s33, 2
        // Predicated region
        $region149: #{branch1_block.1} parent=147 // pred_check
          %p1976 = pneg %p555
        $region150: #{branch1_block.1} parent=147 // pred_check_branch
          %1978 = sbr.rel (%p1976) target = $region152
        $region151: #{branch1_block.1} parent=147 // pred_region
          %p1979 = scmp.lt.s32.totalorder %s39, 1
          %s1980 = scalar_select %p1979, %s39, 1
          %s1981 = smul.addr %s1980, 8
          %s1982 = scalar_lea.vmem %s23, %s1981
        $region152: #{branch1_block.1} parent=147 // pred_fallthru
          _
      $region148: #{branch1_block.1} parent=5 // pred_fallthru
        _
    $region6: #{branch1_block.1} parent=1 // loop_footer
      %s37 = sadd.s32 1, %s33
    $region7: #{branch1_block.1} parent=1 // loop_footer_branch
      %32 = sbr.rel target = $region3
    $region8: #{branch1_block.1} parent=1 // loop_exit
      _
    %1983 = vsyncpa [#allocation3], 1
    %s1984 = scalar_lea.sflag [#allocation3], 1
    %1985 = vsyncpa %s1984, 1
    %1986 = vsyncpa [#allocation5], 1
    %1987 = vsyncpa [#allocation8], 1
    %1988 = vsyncpa [#allocation11], 1

</llo_original>
